<compile_context>
chip_gen: v7x
topology: tpu7x:2x2x1
jax: 0.10.0
libtpu: 0.0.40
codegen_flags: <defaults>
</compile_context>

<pallas_src>
import math
import numpy as np
import jax
import jax.numpy as jnp
from jax.experimental import pallas as pl
from jax.experimental.pallas import tpu as pltpu

# ----------------------------- configuration ------------------------------
B       = 2                 # batch
S       = 8                 # phoneme (src) length
T       = 16                # mel frames (seq_len)
REP     = T // S            # fixed length-regulator upsampling factor
BS      = B * S
BT      = B * T
N_MEL   = 80                # mel bins
MEL_PAD = 128               # lane-dense padded mel dim
H       = 32                # encoder / conditioner hidden
RC      = 32                # denoiser residual channels
L       = 2                 # denoiser residual layers
VOCAB   = 40                # phoneme vocab
N_SPK   = 4                 # speakers

assert T == S * REP
# TODO(synk): RC = H = 32 uses only 32/128 lanes per vreg; for production make
# the channel width a multiple of 128 (or batch gates on wider fused tiles).


# ------------------------------ Pallas kernel ------------------------------

def fused_tts_kernel(
    text_emb_ref, spk_ref, sel_ref, demb_ref, mel_ref,
    w_enc_ref, b_enc_ref,
    w_in_ref, b_in_ref,
    w_z_ref, w_cz_ref, b_z_ref,
    w_rs_ref,
    w_out1_ref, b_out1_ref, w_out2_ref, b_out2_ref,
    out_ref,
):
    f32 = jnp.float32
    bf16 = jnp.bfloat16

    # ---------------- text encoder: relu(emb @ W + b) + speaker_emb ----------
    h_enc = jnp.dot(text_emb_ref[...], w_enc_ref[...],
                    preferred_element_type=f32) + b_enc_ref[...]
    h_enc = jnp.maximum(h_enc, 0.0) + spk_ref[...]              # [BS, H] f32

    # ---------------- length regulator (fixed T//S upsample) -----------------
    # cond[r] = enc[r // REP]; sel is a precomputed 0/1 trace-time constant.
    # TODO(synk): at production seq lengths replace the sel matmul with
    # stride-0 pl.ds reads or a scalar-prefetch index_map (sel is O(BT*BS)).
    cond = jnp.dot(sel_ref[...], h_enc.astype(bf16),
                   preferred_element_type=f32)                  # [BT, H] f32
    cond_b = cond.astype(bf16)

    # diffusion-step embedding: step-MLP already applied per-batch in wrapper.
    demb = demb_ref[...]                                        # [BT, RC] f32

    # ---------------- denoiser: input 1x1 conv + relu ------------------------
    y = jnp.dot(mel_ref[...], w_in_ref[...],
                preferred_element_type=f32) + b_in_ref[...]
    y = jnp.maximum(y, 0.0)                                     # [BT, RC] f32

    # boundary masks for the k=3 conv: [BT, 1] column, lane-broadcast at use,
    # hoisted out of the layer loop.
    t_col = jax.lax.broadcasted_iota(jnp.int32, (BT, 1), 0)
    if T & (T - 1) == 0:
        t_in_seq = jnp.bitwise_and(t_col, T - 1)
    else:
        t_in_seq = t_col % T
    mask_first = t_in_seq == 0
    mask_last = t_in_seq == T - 1

    # loop-invariant conditioner contribution per layer: cond @ w_cz[l] + b_z[l]
    # (acts as the bias of the fused [filter | gate] projection).
    cond_z = [jnp.dot(cond_b, w_cz_ref[l], preferred_element_type=f32)
              + b_z_ref[l] for l in range(L)]                   # L x [BT, 2*RC]

    skip = jnp.zeros((BT, RC), f32)
    inv_sqrt2 = 1.0 / math.sqrt(2.0)

    for l in range(L):                                          # unrolled (L small)
        h = y + demb
        # k=3 conv along time with zero padding; batch folded into rows, so
        # sublane rolls use positive shifts and batch boundaries are masked.
        h_prev = jnp.where(mask_first, 0.0, pltpu.roll(h, 1, axis=0))
        h_next = jnp.where(mask_last, 0.0, pltpu.roll(h, BT - 1, axis=0))
        # fused [prev | center | next] -> single K=96, N=2*RC contraction that
        # produces filter and gate halves in one MXU push.
        x3 = jnp.concatenate([h_prev, h, h_next], axis=-1).astype(bf16)
        z = jnp.dot(x3, w_z_ref[l], preferred_element_type=f32) + cond_z[l]
        gate = jnp.tanh(z[:, :RC]) * jax.nn.sigmoid(z[:, RC:])  # [BT, RC] f32
        # fused [res | skip] projection: one N=2*RC dot, split once.
        rs = jnp.dot(gate.astype(bf16), w_rs_ref[l], preferred_element_type=f32)
        y = (y + rs[:, :RC]) * inv_sqrt2
        skip = skip + rs[:, RC:]

    skip = skip * (1.0 / math.sqrt(L))
    o = jnp.dot(skip.astype(bf16), w_out1_ref[...],
                preferred_element_type=f32) + b_out1_ref[...]
    o = jnp.maximum(o, 0.0)
    o = jnp.dot(o.astype(bf16), w_out2_ref[...],
                preferred_element_type=f32) + b_out2_ref[...]
    out_ref[...] = o.astype(out_ref.dtype)                      # [BT, MEL_PAD]


# ------------------------------ wrapper -------------------------------------

def run_fused_tts(text_emb, spk_bc, sel, demb_bc, mel_pad, p):
    # Single invocation, no grid: every operand is fully VMEM-resident
    # (total footprint is well under 1 MB, far below the scoped VMEM default).
    # TODO(synk): for production seq lengths, tile the B*T row axis with a
    # dimension_semantics=("parallel",) grid (row tile >= 256) so v7x's second
    # TensorCore splits the frames, re-derive the per-tile boundary masks, and
    # re-budget vmem_limit_bytes for v7x's 64 MiB VMEM; emit bf16 output if
    # downstream tolerates it (halves the mem-bound writeback).
    return pl.pallas_call(
        fused_tts_kernel,
        out_shape=jax.ShapeDtypeStruct((BT, MEL_PAD), jnp.float32),
        compiler_params=pltpu.CompilerParams(vmem_limit_bytes=32 * 1024 * 1024),
    )(text_emb, spk_bc, sel, demb_bc, mel_pad,
      p["w_enc"], p["b_enc"],
      p["w_in"], p["b_in"],
      p["w_z"], p["w_cz"], p["b_z"],
      p["w_rs"],
      p["w_out1"], p["b_out1"], p["w_out2"], p["b_out2"])


# ------------------------- parameters & glue ---------------------------------

def make_sel():
    """Trace-time 0/1 length-regulator selection matrix [BT, BS] (batch folded).

    sel[r, c] = 1  iff  r // REP == c, which with r = b*T + t, c = b*S + s is
    exactly b==b' and t//REP == s (cond[b, t] = enc[b, t // REP]).
    """
    r = np.arange(BT)[:, None]
    c = np.arange(BS)[None, :]
    return ((r >= c * REP) & (r < (c + 1) * REP)).astype(np.float32)


def init_params(key):
    ks = jax.random.split(key, 16)
    s = 0.1
    f32, bf16 = jnp.float32, jnp.bfloat16

    def w(k, shape):
        return (jax.random.normal(k, shape, dtype=f32) * s).astype(bf16)

    def pad_rows(a, rows):
        return jnp.pad(a, ((0, rows - a.shape[0]), (0, 0)))

    def pad_cols(a, cols):
        return jnp.pad(a, ((0, 0), (0, cols - a.shape[1])))

    return {
        # DurationPitchSpeakerNet (text encoder + speaker embedding)
        "text_table": (jax.random.normal(ks[0], (VOCAB, H), f32) * s).astype(bf16),
        "spk_table":  jax.random.normal(ks[1], (N_SPK, H), f32) * s,
        "w_enc": w(ks[2], (H, H)),
        "b_enc": jnp.zeros((1, H), f32),
        # diffusion-step MLP (applied per-batch in the wrapper via XLA, f32)
        "w_t1": jax.random.normal(ks[3], (RC, RC), f32) * s,
        "b_t1": jnp.zeros((RC,), f32),
        "w_t2": jax.random.normal(ks[4], (RC, RC), f32) * s,
        "b_t2": jnp.zeros((RC,), f32),
        # Denoiser
        "w_in": pad_rows(w(ks[5], (N_MEL, RC)), MEL_PAD),       # zero-padded rows
        "b_in": jnp.zeros((1, RC), f32),
        # per-layer fused projections:
        #   w_z : [prev|center|next] taps -> [filter | gate]   (K=3*RC, N=2*RC)
        #   w_cz: conditioner            -> [filter | gate]   (loop-invariant)
        "w_z":  w(ks[6], (L, 3 * RC, 2 * RC)),
        "w_cz": w(ks[7], (L, H, 2 * RC)),
        "b_z":  jnp.zeros((L, 1, 2 * RC), f32),
        # fused residual/skip projection: gate -> [res | skip]
        "w_rs": w(ks[8], (L, RC, 2 * RC)),
        "w_out1": w(ks[10], (RC, RC)),
        "b_out1": jnp.zeros((1, RC), f32),
        "w_out2": pad_cols(w(ks[11], (RC, N_MEL)), MEL_PAD),    # zero-padded cols
        "b_out2": jnp.zeros((1, MEL_PAD), f32),                 # padded lanes stay 0
    }


def sinusoidal_step_embedding(timesteps, dim):
    half = dim // 2
    freqs = jnp.exp(-math.log(10000.0) * jnp.arange(half, dtype=jnp.float32) / half)
    args = timesteps.astype(jnp.float32)[:, None] * freqs[None, :]
    return jnp.concatenate([jnp.sin(args), jnp.cos(args)], axis=-1)   # [B, dim]


def cm_total_tts_forward(params, x, timesteps, speakers, texts, src_lens,
                         mel_lens=None, pitch=None):
    """x: [B, 1, T, N_MEL] -> net_out: [B, 1, T, N_MEL]."""
    del src_lens  # full-length phoneme sequences in this synthetic setup

    # ---- embedding lookups (gathers stay in XLA) ----
    text_emb = jnp.take(params["text_table"], texts.reshape(-1), axis=0)  # [B*S, H] bf16
    spk_emb = jnp.take(params["spk_table"], speakers, axis=0)             # [B, H]   f32
    spk_bc = jnp.repeat(spk_emb, S, axis=0)                               # [B*S, H]

    # ---- diffusion-step MLP on un-broadcast [B, RC] rows (f32, XLA) ----
    demb_sin = sinusoidal_step_embedding(timesteps, RC)                   # [B, RC]
    d = demb_sin @ params["w_t1"] + params["b_t1"]
    d = d * jax.nn.sigmoid(d)                                             # swish
    demb = d @ params["w_t2"] + params["b_t2"]                            # [B, RC] f32
    demb_bc = jnp.repeat(demb, T, axis=0)                                 # [B*T, RC] f32

    # ---- length-regulator selection matrix: trace-time constant ----
    sel = jnp.asarray(make_sel(), dtype=jnp.bfloat16)                     # [B*T, B*S]

    # ---- mel: [B,1,T,80] -> channels-last rows [B*T, 80] -> lane-pad to 128 ----
    mel = x[:, 0, :, :].reshape(BT, N_MEL)
    mel_pad = jnp.pad(mel, ((0, 0), (0, MEL_PAD - N_MEL))).astype(jnp.bfloat16)

    # ---- fused encoder + length regulator + denoiser ----
    net = run_fused_tts(text_emb, spk_bc, sel, demb_bc, mel_pad, params)  # [B*T, 128]
    net = net[:, :N_MEL].reshape(B, T, N_MEL)

    # ---- mel masking (dynamic mel_lens), back to PyTorch [B,1,seq,80] ----
    if mel_lens is None:
        mel_lens = jnp.full((B,), T, dtype=jnp.int32)
    mel_masks = jnp.arange(T)[None, :] >= mel_lens[:, None]               # True = pad
    net = net * (~mel_masks)[:, :, None].astype(net.dtype)

    # TODO(synk): real duration/pitch/energy predictors and CMLoss / p_targets
    # training branch are not exercised (pitch=None), matching the reference
    # forward when pitch is None.
    return net[:, None, :, :]                                             # [B,1,T,80]


# ----------------------------------- main -----------------------------------

if __name__ == "__main__":
    key = jax.random.PRNGKey(0)
    k_p, k_x = jax.random.split(key)
    params = init_params(k_p)

    x = jax.random.normal(k_x, (B, 1, T, N_MEL), dtype=jnp.float32)
    timesteps = jnp.array([3, 7], dtype=jnp.int32)
    speakers = jnp.array([0, 2], dtype=jnp.int32)
    texts = (jnp.arange(B * S, dtype=jnp.int32) % VOCAB).reshape(B, S)
    src_lens = jnp.full((B,), S, dtype=jnp.int32)
    mel_lens = jnp.full((B,), T, dtype=jnp.int32)

    out = cm_total_tts_forward(params, x, timesteps, speakers, texts,
                               src_lens, mel_lens=mel_lens, pitch=None)
    out = jax.block_until_ready(out)
    assert out.shape == (B, 1, T, N_MEL), out.shape
    assert bool(jnp.all(jnp.isfinite(out)))
    print("KERNEL_OK")
</pallas_src>

<mosaic_0001>
module attributes {stable_mosaic.version = 11 : i64} {
  func.func @fused_tts_kernel(%arg0: memref<16x32xbf16, #tpu.memory_space<vmem>>, %arg1: memref<16x32xf32, #tpu.memory_space<vmem>>, %arg2: memref<32x16xbf16, #tpu.memory_space<vmem>>, %arg3: memref<32x32xf32, #tpu.memory_space<vmem>>, %arg4: memref<32x128xbf16, #tpu.memory_space<vmem>>, %arg5: memref<32x32xbf16, #tpu.memory_space<vmem>>, %arg6: memref<1x32xf32, #tpu.memory_space<vmem>>, %arg7: memref<128x32xbf16, #tpu.memory_space<vmem>>, %arg8: memref<1x32xf32, #tpu.memory_space<vmem>>, %arg9: memref<2x96x64xbf16, #tpu.memory_space<vmem>>, %arg10: memref<2x32x64xbf16, #tpu.memory_space<vmem>>, %arg11: memref<2x1x64xf32, #tpu.memory_space<vmem>>, %arg12: memref<2x32x64xbf16, #tpu.memory_space<vmem>>, %arg13: memref<32x32xbf16, #tpu.memory_space<vmem>>, %arg14: memref<1x32xf32, #tpu.memory_space<vmem>>, %arg15: memref<32x128xbf16, #tpu.memory_space<vmem>>, %arg16: memref<1x128xf32, #tpu.memory_space<vmem>>, %arg17: memref<32x128xf32, #tpu.memory_space<vmem>>) attributes {dimension_semantics = [], scalar_prefetch = 0 : i64, scratch_operands = 0 : i64, tpu.core_type = #tpu.core_type<tc>} {
    %c0 = arith.constant 0 : index
    %c0_0 = arith.constant 0 : index
    %0 = vector.load %arg0[%c0, %c0_0] : memref<16x32xbf16, #tpu.memory_space<vmem>>, vector<16x32xbf16>
    %c0_1 = arith.constant 0 : index
    %c0_2 = arith.constant 0 : index
    %1 = vector.load %arg5[%c0_1, %c0_2] : memref<32x32xbf16, #tpu.memory_space<vmem>>, vector<32x32xbf16>
    %cst = arith.constant dense<0.000000e+00> : vector<16x32xf32>
    %2 = tpu.matmul %0, %1, %cst {dimension_numbers = #tpu.dot_dimension_numbers<[1], [0], [0], [1], [0, 0, 1, 1], [], []>} : vector<16x32xbf16>, vector<32x32xbf16>, vector<16x32xf32> -> vector<16x32xf32>
    %c0_3 = arith.constant 0 : index
    %c0_4 = arith.constant 0 : index
    %3 = vector.load %arg6[%c0_3, %c0_4] : memref<1x32xf32, #tpu.memory_space<vmem>>, vector<1x32xf32>
    %4 = vector.broadcast %3 : vector<1x32xf32> to vector<16x32xf32>
    %5 = arith.addf %2, %4 : vector<16x32xf32>
    %cst_5 = arith.constant 0.000000e+00 : f32
    %6 = vector.broadcast %cst_5 : f32 to vector<16x32xf32>
    %7 = arith.maximumf %5, %6 : vector<16x32xf32>
    %c0_6 = arith.constant 0 : index
    %c0_7 = arith.constant 0 : index
    %8 = vector.load %arg1[%c0_6, %c0_7] : memref<16x32xf32, #tpu.memory_space<vmem>>, vector<16x32xf32>
    %9 = arith.addf %7, %8 : vector<16x32xf32>
    %c0_8 = arith.constant 0 : index
    %c0_9 = arith.constant 0 : index
    %10 = vector.load %arg2[%c0_8, %c0_9] : memref<32x16xbf16, #tpu.memory_space<vmem>>, vector<32x16xbf16>
    %11 = arith.truncf %9 : vector<16x32xf32> to vector<16x32xbf16>
    %cst_10 = arith.constant dense<0.000000e+00> : vector<32x32xf32>
    %12 = tpu.matmul %10, %11, %cst_10 {dimension_numbers = #tpu.dot_dimension_numbers<[1], [0], [0], [1], [0, 0, 1, 1], [], []>} : vector<32x16xbf16>, vector<16x32xbf16>, vector<32x32xf32> -> vector<32x32xf32>
    %13 = arith.truncf %12 : vector<32x32xf32> to vector<32x32xbf16>
    %c0_11 = arith.constant 0 : index
    %c0_12 = arith.constant 0 : index
    %14 = vector.load %arg3[%c0_11, %c0_12] : memref<32x32xf32, #tpu.memory_space<vmem>>, vector<32x32xf32>
    %c0_13 = arith.constant 0 : index
    %c0_14 = arith.constant 0 : index
    %15 = vector.load %arg4[%c0_13, %c0_14] : memref<32x128xbf16, #tpu.memory_space<vmem>>, vector<32x128xbf16>
    %c0_15 = arith.constant 0 : index
    %c0_16 = arith.constant 0 : index
    %16 = vector.load %arg7[%c0_15, %c0_16] : memref<128x32xbf16, #tpu.memory_space<vmem>>, vector<128x32xbf16>
    %cst_17 = arith.constant dense<0.000000e+00> : vector<32x32xf32>
    %17 = tpu.matmul %15, %16, %cst_17 {dimension_numbers = #tpu.dot_dimension_numbers<[1], [0], [0], [1], [0, 0, 1, 1], [], []>} : vector<32x128xbf16>, vector<128x32xbf16>, vector<32x32xf32> -> vector<32x32xf32>
    %c0_18 = arith.constant 0 : index
    %c0_19 = arith.constant 0 : index
    %18 = vector.load %arg8[%c0_18, %c0_19] : memref<1x32xf32, #tpu.memory_space<vmem>>, vector<1x32xf32>
    %19 = vector.broadcast %18 : vector<1x32xf32> to vector<32x32xf32>
    %20 = arith.addf %17, %19 : vector<32x32xf32>
    %cst_20 = arith.constant 0.000000e+00 : f32
    %21 = vector.broadcast %cst_20 : f32 to vector<32x32xf32>
    %22 = arith.maximumf %20, %21 : vector<32x32xf32>
    %23 = tpu.iota {dimensions = array<i32: 0>} : vector<32x1xi32>
    %c15_i32 = arith.constant 15 : i32
    %24 = vector.broadcast %c15_i32 : i32 to vector<32x1xi32>
    %25 = arith.andi %23, %24 : vector<32x1xi32>
    %c0_i32 = arith.constant 0 : i32
    %26 = vector.broadcast %c0_i32 : i32 to vector<32x1xi32>
    %27 = arith.cmpi eq, %25, %26 : vector<32x1xi32>
    %c15_i32_21 = arith.constant 15 : i32
    %28 = vector.broadcast %c15_i32_21 : i32 to vector<32x1xi32>
    %29 = arith.cmpi eq, %25, %28 : vector<32x1xi32>
    %c0_22 = arith.constant 0 : index
    %c0_23 = arith.constant 0 : index
    %c0_24 = arith.constant 0 : index
    %30 = vector.load %arg10[%c0_22, %c0_23, %c0_24] : memref<2x32x64xbf16, #tpu.memory_space<vmem>>, vector<1x32x64xbf16>
    %31 = vector.shape_cast %30 : vector<1x32x64xbf16> to vector<32x64xbf16>
    %cst_25 = arith.constant dense<0.000000e+00> : vector<32x64xf32>
    %32 = tpu.matmul %13, %31, %cst_25 {dimension_numbers = #tpu.dot_dimension_numbers<[1], [0], [0], [1], [0, 0, 1, 1], [], []>} : vector<32x32xbf16>, vector<32x64xbf16>, vector<32x64xf32> -> vector<32x64xf32>
    %c0_26 = arith.constant 0 : index
    %c0_27 = arith.constant 0 : index
    %c0_28 = arith.constant 0 : index
    %33 = vector.load %arg11[%c0_26, %c0_27, %c0_28] : memref<2x1x64xf32, #tpu.memory_space<vmem>>, vector<1x1x64xf32>
    %34 = vector.shape_cast %33 : vector<1x1x64xf32> to vector<1x64xf32>
    %35 = vector.broadcast %34 : vector<1x64xf32> to vector<32x64xf32>
    %36 = arith.addf %32, %35 : vector<32x64xf32>
    %c1 = arith.constant 1 : index
    %c0_29 = arith.constant 0 : index
    %c0_30 = arith.constant 0 : index
    %37 = vector.load %arg10[%c1, %c0_29, %c0_30] : memref<2x32x64xbf16, #tpu.memory_space<vmem>>, vector<1x32x64xbf16>
    %38 = vector.shape_cast %37 : vector<1x32x64xbf16> to vector<32x64xbf16>
    %cst_31 = arith.constant dense<0.000000e+00> : vector<32x64xf32>
    %39 = tpu.matmul %13, %38, %cst_31 {dimension_numbers = #tpu.dot_dimension_numbers<[1], [0], [0], [1], [0, 0, 1, 1], [], []>} : vector<32x32xbf16>, vector<32x64xbf16>, vector<32x64xf32> -> vector<32x64xf32>
    %c1_32 = arith.constant 1 : index
    %c0_33 = arith.constant 0 : index
    %c0_34 = arith.constant 0 : index
    %40 = vector.load %arg11[%c1_32, %c0_33, %c0_34] : memref<2x1x64xf32, #tpu.memory_space<vmem>>, vector<1x1x64xf32>
    %41 = vector.shape_cast %40 : vector<1x1x64xf32> to vector<1x64xf32>
    %42 = vector.broadcast %41 : vector<1x64xf32> to vector<32x64xf32>
    %43 = arith.addf %39, %42 : vector<32x64xf32>
    %cst_35 = arith.constant 0.000000e+00 : f32
    %44 = vector.broadcast %cst_35 : f32 to vector<32x32xf32>
    %45 = arith.addf %22, %14 : vector<32x32xf32>
    %c1_i32 = arith.constant 1 : i32
    %46 = tpu.dynamic_rotate %45 by %c1_i32 dim 0 : vector<32x32xf32>, i32 -> vector<32x32xf32>
    %cst_36 = arith.constant 0.000000e+00 : f32
    %47 = vector.shape_cast %27 : vector<32x1xi1> to vector<32x1xi1>
    %48 = vector.broadcast %47 : vector<32x1xi1> to vector<32x32xi1>
    %49 = vector.broadcast %cst_36 : f32 to vector<32x32xf32>
    %50 = arith.select %48, %49, %46 : vector<32x32xi1>, vector<32x32xf32>
    %c31_i32 = arith.constant 31 : i32
    %51 = tpu.dynamic_rotate %45 by %c31_i32 dim 0 : vector<32x32xf32>, i32 -> vector<32x32xf32>
    %cst_37 = arith.constant 0.000000e+00 : f32
    %52 = vector.shape_cast %29 : vector<32x1xi1> to vector<32x1xi1>
    %53 = vector.broadcast %52 : vector<32x1xi1> to vector<32x32xi1>
    %54 = vector.broadcast %cst_37 : f32 to vector<32x32xf32>
    %55 = arith.select %53, %54, %51 : vector<32x32xi1>, vector<32x32xf32>
    %56 = tpu.concatenate %50, %45, %55 in 1 : vector<32x32xf32>, vector<32x32xf32>, vector<32x32xf32> -> vector<32x96xf32>
    %57 = arith.truncf %56 : vector<32x96xf32> to vector<32x96xbf16>
    %c0_38 = arith.constant 0 : index
    %c0_39 = arith.constant 0 : index
    %c0_40 = arith.constant 0 : index
    %58 = vector.load %arg9[%c0_38, %c0_39, %c0_40] : memref<2x96x64xbf16, #tpu.memory_space<vmem>>, vector<1x96x64xbf16>
    %59 = vector.shape_cast %58 : vector<1x96x64xbf16> to vector<96x64xbf16>
    %cst_41 = arith.constant dense<0.000000e+00> : vector<32x64xf32>
    %60 = tpu.matmul %57, %59, %cst_41 {dimension_numbers = #tpu.dot_dimension_numbers<[1], [0], [0], [1], [0, 0, 1, 1], [], []>} : vector<32x96xbf16>, vector<96x64xbf16>, vector<32x64xf32> -> vector<32x64xf32>
    %61 = arith.addf %60, %36 : vector<32x64xf32>
    %62 = vector.extract_strided_slice %61 {offsets = [0, 0], sizes = [32, 32], strides = [1, 1]} : vector<32x64xf32> to vector<32x32xf32>
    %63 = math.tanh %62 : vector<32x32xf32>
    %64 = vector.extract_strided_slice %61 {offsets = [0, 32], sizes = [32, 32], strides = [1, 1]} : vector<32x64xf32> to vector<32x32xf32>
    %65 = arith.negf %64 : vector<32x32xf32>
    %66 = math.exp %65 : vector<32x32xf32>
    %cst_42 = arith.constant 1.000000e+00 : f32
    %67 = vector.broadcast %cst_42 : f32 to vector<32x32xf32>
    %68 = arith.addf %67, %66 : vector<32x32xf32>
    %69 = arith.divf %67, %68 : vector<32x32xf32>
    %70 = arith.mulf %63, %69 : vector<32x32xf32>
    %71 = arith.truncf %70 : vector<32x32xf32> to vector<32x32xbf16>
    %c0_43 = arith.constant 0 : index
    %c0_44 = arith.constant 0 : index
    %c0_45 = arith.constant 0 : index
    %72 = vector.load %arg12[%c0_43, %c0_44, %c0_45] : memref<2x32x64xbf16, #tpu.memory_space<vmem>>, vector<1x32x64xbf16>
    %73 = vector.shape_cast %72 : vector<1x32x64xbf16> to vector<32x64xbf16>
    %cst_46 = arith.constant dense<0.000000e+00> : vector<32x64xf32>
    %74 = tpu.matmul %71, %73, %cst_46 {dimension_numbers = #tpu.dot_dimension_numbers<[1], [0], [0], [1], [0, 0, 1, 1], [], []>} : vector<32x32xbf16>, vector<32x64xbf16>, vector<32x64xf32> -> vector<32x64xf32>
    %75 = vector.extract_strided_slice %74 {offsets = [0, 0], sizes = [32, 32], strides = [1, 1]} : vector<32x64xf32> to vector<32x32xf32>
    %76 = arith.addf %22, %75 : vector<32x32xf32>
    %cst_47 = arith.constant 0.707106769 : f32
    %77 = vector.broadcast %cst_47 : f32 to vector<32x32xf32>
    %78 = arith.mulf %76, %77 : vector<32x32xf32>
    %79 = vector.extract_strided_slice %74 {offsets = [0, 32], sizes = [32, 32], strides = [1, 1]} : vector<32x64xf32> to vector<32x32xf32>
    %80 = arith.addf %44, %79 : vector<32x32xf32>
    %81 = arith.addf %78, %14 : vector<32x32xf32>
    %c1_i32_48 = arith.constant 1 : i32
    %82 = tpu.dynamic_rotate %81 by %c1_i32_48 dim 0 : vector<32x32xf32>, i32 -> vector<32x32xf32>
    %cst_49 = arith.constant 0.000000e+00 : f32
    %83 = vector.shape_cast %27 : vector<32x1xi1> to vector<32x1xi1>
    %84 = vector.broadcast %83 : vector<32x1xi1> to vector<32x32xi1>
    %85 = vector.broadcast %cst_49 : f32 to vector<32x32xf32>
    %86 = arith.select %84, %85, %82 : vector<32x32xi1>, vector<32x32xf32>
    %c31_i32_50 = arith.constant 31 : i32
    %87 = tpu.dynamic_rotate %81 by %c31_i32_50 dim 0 : vector<32x32xf32>, i32 -> vector<32x32xf32>
    %cst_51 = arith.constant 0.000000e+00 : f32
    %88 = vector.shape_cast %29 : vector<32x1xi1> to vector<32x1xi1>
    %89 = vector.broadcast %88 : vector<32x1xi1> to vector<32x32xi1>
    %90 = vector.broadcast %cst_51 : f32 to vector<32x32xf32>
    %91 = arith.select %89, %90, %87 : vector<32x32xi1>, vector<32x32xf32>
    %92 = tpu.concatenate %86, %81, %91 in 1 : vector<32x32xf32>, vector<32x32xf32>, vector<32x32xf32> -> vector<32x96xf32>
    %93 = arith.truncf %92 : vector<32x96xf32> to vector<32x96xbf16>
    %c1_52 = arith.constant 1 : index
    %c0_53 = arith.constant 0 : index
    %c0_54 = arith.constant 0 : index
    %94 = vector.load %arg9[%c1_52, %c0_53, %c0_54] : memref<2x96x64xbf16, #tpu.memory_space<vmem>>, vector<1x96x64xbf16>
    %95 = vector.shape_cast %94 : vector<1x96x64xbf16> to vector<96x64xbf16>
    %cst_55 = arith.constant dense<0.000000e+00> : vector<32x64xf32>
    %96 = tpu.matmul %93, %95, %cst_55 {dimension_numbers = #tpu.dot_dimension_numbers<[1], [0], [0], [1], [0, 0, 1, 1], [], []>} : vector<32x96xbf16>, vector<96x64xbf16>, vector<32x64xf32> -> vector<32x64xf32>
    %97 = arith.addf %96, %43 : vector<32x64xf32>
    %98 = vector.extract_strided_slice %97 {offsets = [0, 0], sizes = [32, 32], strides = [1, 1]} : vector<32x64xf32> to vector<32x32xf32>
    %99 = math.tanh %98 : vector<32x32xf32>
    %100 = vector.extract_strided_slice %97 {offsets = [0, 32], sizes = [32, 32], strides = [1, 1]} : vector<32x64xf32> to vector<32x32xf32>
    %101 = arith.negf %100 : vector<32x32xf32>
    %102 = math.exp %101 : vector<32x32xf32>
    %cst_56 = arith.constant 1.000000e+00 : f32
    %103 = vector.broadcast %cst_56 : f32 to vector<32x32xf32>
    %104 = arith.addf %103, %102 : vector<32x32xf32>
    %105 = arith.divf %103, %104 : vector<32x32xf32>
    %106 = arith.mulf %99, %105 : vector<32x32xf32>
    %107 = arith.truncf %106 : vector<32x32xf32> to vector<32x32xbf16>
    %c1_57 = arith.constant 1 : index
    %c0_58 = arith.constant 0 : index
    %c0_59 = arith.constant 0 : index
    %108 = vector.load %arg12[%c1_57, %c0_58, %c0_59] : memref<2x32x64xbf16, #tpu.memory_space<vmem>>, vector<1x32x64xbf16>
    %109 = vector.shape_cast %108 : vector<1x32x64xbf16> to vector<32x64xbf16>
    %cst_60 = arith.constant dense<0.000000e+00> : vector<32x64xf32>
    %110 = tpu.matmul %107, %109, %cst_60 {dimension_numbers = #tpu.dot_dimension_numbers<[1], [0], [0], [1], [0, 0, 1, 1], [], []>} : vector<32x32xbf16>, vector<32x64xbf16>, vector<32x64xf32> -> vector<32x64xf32>
    %111 = vector.extract_strided_slice %110 {offsets = [0, 32], sizes = [32, 32], strides = [1, 1]} : vector<32x64xf32> to vector<32x32xf32>
    %112 = arith.addf %80, %111 : vector<32x32xf32>
    %cst_61 = arith.constant 0.707106769 : f32
    %113 = vector.broadcast %cst_61 : f32 to vector<32x32xf32>
    %114 = arith.mulf %112, %113 : vector<32x32xf32>
    %115 = arith.truncf %114 : vector<32x32xf32> to vector<32x32xbf16>
    %c0_62 = arith.constant 0 : index
    %c0_63 = arith.constant 0 : index
    %116 = vector.load %arg13[%c0_62, %c0_63] : memref<32x32xbf16, #tpu.memory_space<vmem>>, vector<32x32xbf16>
    %cst_64 = arith.constant dense<0.000000e+00> : vector<32x32xf32>
    %117 = tpu.matmul %115, %116, %cst_64 {dimension_numbers = #tpu.dot_dimension_numbers<[1], [0], [0], [1], [0, 0, 1, 1], [], []>} : vector<32x32xbf16>, vector<32x32xbf16>, vector<32x32xf32> -> vector<32x32xf32>
    %c0_65 = arith.constant 0 : index
    %c0_66 = arith.constant 0 : index
    %118 = vector.load %arg14[%c0_65, %c0_66] : memref<1x32xf32, #tpu.memory_space<vmem>>, vector<1x32xf32>
    %119 = vector.broadcast %118 : vector<1x32xf32> to vector<32x32xf32>
    %120 = arith.addf %117, %119 : vector<32x32xf32>
    %cst_67 = arith.constant 0.000000e+00 : f32
    %121 = vector.broadcast %cst_67 : f32 to vector<32x32xf32>
    %122 = arith.maximumf %120, %121 : vector<32x32xf32>
    %123 = arith.truncf %122 : vector<32x32xf32> to vector<32x32xbf16>
    %c0_68 = arith.constant 0 : index
    %c0_69 = arith.constant 0 : index
    %124 = vector.load %arg15[%c0_68, %c0_69] : memref<32x128xbf16, #tpu.memory_space<vmem>>, vector<32x128xbf16>
    %cst_70 = arith.constant dense<0.000000e+00> : vector<32x128xf32>
    %125 = tpu.matmul %123, %124, %cst_70 {dimension_numbers = #tpu.dot_dimension_numbers<[1], [0], [0], [1], [0, 0, 1, 1], [], []>} : vector<32x32xbf16>, vector<32x128xbf16>, vector<32x128xf32> -> vector<32x128xf32>
    %c0_71 = arith.constant 0 : index
    %c0_72 = arith.constant 0 : index
    %126 = vector.load %arg16[%c0_71, %c0_72] : memref<1x128xf32, #tpu.memory_space<vmem>>, vector<1x128xf32>
    %127 = vector.broadcast %126 : vector<1x128xf32> to vector<32x128xf32>
    %128 = arith.addf %125, %127 : vector<32x128xf32>
    %c0_73 = arith.constant 0 : index
    %c0_74 = arith.constant 0 : index
    %129 = vector.load %arg17[%c0_73, %c0_74] : memref<32x128xf32, #tpu.memory_space<vmem>>, vector<32x128xf32>
    tpu.vector_store %arg17[%c0_73, %c0_74], %128 {strides = array<i32>} : memref<32x128xf32, #tpu.memory_space<vmem>>, vector<32x128xf32>,
    return
  }
}

</mosaic_0001>

<llo_original>
// kernel: tpu_custom_call.1
$region0: #{tpu_custom_call.1}
  #allocation0 [shape = 'u32[]', space=smem, size = 0x4, offset = 0x4, fixed_abs, tag = 'smem constant byte address 0x4 - core index']
  #allocation1 [shape = 'u32[144,128]{1,0:T(1,128)}', space=vmem, size = 0x12000, scoped, tag = 'internal scratch']
  %s0 = inlined_call_operand.vmem [shape: bf16[16,32], index: 0, kind: input, shape index: {}]
  %s1 = inlined_call_operand.vmem [shape: f32[16,32], index: 1, kind: input, shape index: {}]
  %s2 = inlined_call_operand.vmem [shape: bf16[32,16], index: 2, kind: input, shape index: {}]
  %s3 = inlined_call_operand.vmem [shape: f32[32,32], index: 3, kind: input, shape index: {}]
  %s4 = inlined_call_operand.vmem [shape: bf16[32,128], index: 4, kind: input, shape index: {}]
  %s5 = inlined_call_operand.vmem [shape: bf16[32,32], index: 5, kind: input, shape index: {}]
  %s6 = inlined_call_operand.vmem [shape: f32[1,32], index: 6, kind: input, shape index: {}]
  %s7 = inlined_call_operand.vmem [shape: bf16[128,32], index: 7, kind: input, shape index: {}]
  %s8 = inlined_call_operand.vmem [shape: f32[1,32], index: 8, kind: input, shape index: {}]
  %s9 = inlined_call_operand.vmem [shape: bf16[2,96,64], index: 9, kind: input, shape index: {}]
  %s10 = inlined_call_operand.vmem [shape: bf16[2,32,64], index: 10, kind: input, shape index: {}]
  %s11 = inlined_call_operand.vmem [shape: f32[2,1,64], index: 11, kind: input, shape index: {}]
  %s12 = inlined_call_operand.vmem [shape: bf16[2,32,64], index: 12, kind: input, shape index: {}]
  %s13 = inlined_call_operand.vmem [shape: bf16[32,32], index: 13, kind: input, shape index: {}]
  %s14 = inlined_call_operand.vmem [shape: f32[1,32], index: 14, kind: input, shape index: {}]
  %s15 = inlined_call_operand.vmem [shape: bf16[32,128], index: 15, kind: input, shape index: {}]
  %s16 = inlined_call_operand.vmem [shape: f32[1,128], index: 16, kind: input, shape index: {}]
  %s17 = inlined_call_operand.hbm [shape: f32[32,128], index: 17, kind: output, shape index: {}]
  %s18 = sld [smem:[#allocation0]]
  $region78: #{tpu_custom_call.1} parent=0
    _
  %s20 = ssub.s32 1, %s18
  %s21 = scalar_select 0, %s20, %s18
  $region1: #{tpu_custom_call.1} parent=0
    #allocation2 [shape = 'u8[16384]{0}', space=vmem, size = 0x4000, scoped, tag = 'output window, operand 0, single buffered']
    #allocation3 [shape = 's32[1]{0}', space=sflag, size = 0x4, scoped, tag = 'scoped memory for tpu_custom_call.1']
    %22 = vsyncpa [#allocation3], 0
    // Predicated region
    $region2: #{tpu_custom_call.1} parent=1 // pred_check
      _
    $region3: #{tpu_custom_call.1} parent=1 // pred_check_branch
      %24 = sbr.rel (0) target = $region5
    $region4: #{tpu_custom_call.1} parent=1 // pred_region
      _
    $region5: #{tpu_custom_call.1} parent=1 // pred_fallthru
      _
    // Predicated region
    $region6: #{tpu_custom_call.1} parent=1 // pred_check
      _
    $region7: #{tpu_custom_call.1} parent=1 // pred_check_branch
      %26 = sbr.rel (0) target = $region9
    $region8: #{tpu_custom_call.1} parent=1 // pred_region
      _
    $region9: #{tpu_custom_call.1} parent=1 // pred_fallthru
      _
    // Predicated region
    $region10: #{tpu_custom_call.1} parent=1 // pred_check
      _
    $region11: #{tpu_custom_call.1} parent=1 // pred_check_branch
      %28 = sbr.rel (0) target = $region13
    $region12: #{tpu_custom_call.1} parent=1 // pred_region
      _
    $region13: #{tpu_custom_call.1} parent=1 // pred_fallthru
      _
    // Predicated region
    $region14: #{tpu_custom_call.1} parent=1 // pred_check
      _
    $region15: #{tpu_custom_call.1} parent=1 // pred_check_branch
      %30 = sbr.rel (0) target = $region17
    $region16: #{tpu_custom_call.1} parent=1 // pred_region
      _
    $region17: #{tpu_custom_call.1} parent=1 // pred_fallthru
      _
    // Predicated region
    $region18: #{tpu_custom_call.1} parent=1 // pred_check
      _
    $region19: #{tpu_custom_call.1} parent=1 // pred_check_branch
      %32 = sbr.rel (0) target = $region21
    $region20: #{tpu_custom_call.1} parent=1 // pred_region
      _
    $region21: #{tpu_custom_call.1} parent=1 // pred_fallthru
      _
    // Predicated region
    $region22: #{tpu_custom_call.1} parent=1 // pred_check
      _
    $region23: #{tpu_custom_call.1} parent=1 // pred_check_branch
      %34 = sbr.rel (0) target = $region25
    $region24: #{tpu_custom_call.1} parent=1 // pred_region
      _
    $region25: #{tpu_custom_call.1} parent=1 // pred_fallthru
      _
    // Predicated region
    $region26: #{tpu_custom_call.1} parent=1 // pred_check
      _
    $region27: #{tpu_custom_call.1} parent=1 // pred_check_branch
      %36 = sbr.rel (0) target = $region29
    $region28: #{tpu_custom_call.1} parent=1 // pred_region
      _
    $region29: #{tpu_custom_call.1} parent=1 // pred_fallthru
      _
    // Predicated region
    $region30: #{tpu_custom_call.1} parent=1 // pred_check
      _
    $region31: #{tpu_custom_call.1} parent=1 // pred_check_branch
      %38 = sbr.rel (0) target = $region33
    $region32: #{tpu_custom_call.1} parent=1 // pred_region
      _
    $region33: #{tpu_custom_call.1} parent=1 // pred_fallthru
      _
    // Predicated region
    $region34: #{tpu_custom_call.1} parent=1 // pred_check
      _
    $region35: #{tpu_custom_call.1} parent=1 // pred_check_branch
      %40 = sbr.rel (0) target = $region37
    $region36: #{tpu_custom_call.1} parent=1 // pred_region
      _
    $region37: #{tpu_custom_call.1} parent=1 // pred_fallthru
      _
    // Predicated region
    $region38: #{tpu_custom_call.1} parent=1 // pred_check
      _
    $region39: #{tpu_custom_call.1} parent=1 // pred_check_branch
      %42 = sbr.rel (0) target = $region41
    $region40: #{tpu_custom_call.1} parent=1 // pred_region
      _
    $region41: #{tpu_custom_call.1} parent=1 // pred_fallthru
      _
    // Predicated region
    $region42: #{tpu_custom_call.1} parent=1 // pred_check
      _
    $region43: #{tpu_custom_call.1} parent=1 // pred_check_branch
      %44 = sbr.rel (0) target = $region45
    $region44: #{tpu_custom_call.1} parent=1 // pred_region
      _
    $region45: #{tpu_custom_call.1} parent=1 // pred_fallthru
      _
    // Predicated region
    $region46: #{tpu_custom_call.1} parent=1 // pred_check
      _
    $region47: #{tpu_custom_call.1} parent=1 // pred_check_branch
      %46 = sbr.rel (0) target = $region49
    $region48: #{tpu_custom_call.1} parent=1 // pred_region
      _
    $region49: #{tpu_custom_call.1} parent=1 // pred_fallthru
      _
    // Predicated region
    $region50: #{tpu_custom_call.1} parent=1 // pred_check
      _
    $region51: #{tpu_custom_call.1} parent=1 // pred_check_branch
      %48 = sbr.rel (0) target = $region53
    $region52: #{tpu_custom_call.1} parent=1 // pred_region
      _
    $region53: #{tpu_custom_call.1} parent=1 // pred_fallthru
      _
    // Predicated region
    $region54: #{tpu_custom_call.1} parent=1 // pred_check
      _
    $region55: #{tpu_custom_call.1} parent=1 // pred_check_branch
      %50 = sbr.rel (0) target = $region57
    $region56: #{tpu_custom_call.1} parent=1 // pred_region
      _
    $region57: #{tpu_custom_call.1} parent=1 // pred_fallthru
      _
    // Predicated region
    $region58: #{tpu_custom_call.1} parent=1 // pred_check
      _
    $region59: #{tpu_custom_call.1} parent=1 // pred_check_branch
      %52 = sbr.rel (0) target = $region61
    $region60: #{tpu_custom_call.1} parent=1 // pred_region
      _
    $region61: #{tpu_custom_call.1} parent=1 // pred_fallthru
      _
    // Predicated region
    $region62: #{tpu_custom_call.1} parent=1 // pred_check
      _
    $region63: #{tpu_custom_call.1} parent=1 // pred_check_branch
      %54 = sbr.rel (0) target = $region65
    $region64: #{tpu_custom_call.1} parent=1 // pred_region
      _
    $region65: #{tpu_custom_call.1} parent=1 // pred_fallthru
      _
    // Predicated region
    $region66: #{tpu_custom_call.1} parent=1 // pred_check
      _
    $region67: #{tpu_custom_call.1} parent=1 // pred_check_branch
      %56 = sbr.rel (0) target = $region69
    $region68: #{tpu_custom_call.1} parent=1 // pred_region
      _
    $region69: #{tpu_custom_call.1} parent=1 // pred_fallthru
      _
    %v58 = vld [vmem:[%s0] sm:$0xf]
    %v59 = vld [vmem:[%s0 + $0x4] sm:$0xf]
    %v60 = vld [vmem:[%s5] sm:$0xf]
    %v61 = vld [vmem:[%s5 + $0x4] sm:$0xf]
    %v62 = vld [vmem:[%s5 + $0x8] sm:$0xf]
    %v63 = vld [vmem:[%s5 + $0xc] sm:$0xf]
    %v64 = vld [vmem:[%s6] sm:$0x1]
    %v66 = vlaneseq
    %v67 = vshrl.u32 %v66, 7
    %v68 = vsub.s32 0, %v67
    %v69 = vrot.slane %v64, %v68
    %v73 = vunpack.c.l.b16 %v58
    %v74 = vunpack.c.l.b16 %v59
    %v75 = vpack.c.b16 %v74, %v73
    %v80 = vunpack.c.l.b16 %v60
    %v81 = vunpack.c.l.b16 %v61
    %v82 = vunpack.c.l.b16 %v62
    %v83 = vunpack.c.l.b16 %v63
    %v84 = vpack.c.b16 %v81, %v80
    %v85 = vpack.c.b16 %v83, %v82
    %vm88 = vcmask 261120
    %v90 = vsel %vm88, %v75, 0
    %92 = vmatprep.subr.bf16.mxu0 0
    %93 = vmatpush1.bf16.msra.mxu0 %v84
    %94 = vmatprep.subr.bf16.mxu0 0
    %95 = vmatpush1.bf16.msra.mxu0 %v85
    %96 = vmatprep.subr.bf16.mxu0 0
    %97 = vmatpush1.bf16.msra.mxu0 0
    %98 = vmatprep.subr.bf16.mxu0 0
    %99 = vmatpush1.bf16.msra.mxu0 0
    %100 = vmatprep.subr.bf16.mxu0 0
    %101 = vmatpush1.bf16.msra.mxu0 0
    %102 = vmatprep.subr.bf16.mxu0 0
    %103 = vmatpush1.bf16.msra.mxu0 0
    %104 = vmatprep.subr.bf16.mxu0 0
    %105 = vmatpush1.bf16.msra.mxu0 0
    %106 = vmatprep.subr.bf16.mxu0 0
    %107 = vmatpush1.bf16.msra.mxu0 0
    %108 = vmatprep.subr.bf16.mxu0 0
    %109 = vmatpush1.bf16.msra.mxu0 0
    %110 = vmatprep.subr.bf16.mxu0 0
    %111 = vmatpush1.bf16.msra.mxu0 0
    %112 = vmatprep.subr.bf16.mxu0 0
    %113 = vmatpush1.bf16.msra.mxu0 0
    %114 = vmatprep.subr.bf16.mxu0 0
    %115 = vmatpush1.bf16.msra.mxu0 0
    %116 = vmatprep.subr.bf16.mxu0 0
    %117 = vmatpush1.bf16.msra.mxu0 0
    %118 = vmatprep.subr.bf16.mxu0 0
    %119 = vmatpush1.bf16.msra.mxu0 0
    %120 = vmatprep.subr.bf16.mxu0 0
    %121 = vmatpush1.bf16.msra.mxu0 0
    %122 = vmatprep.subr.bf16.mxu0 0
    %123 = vmatpush1.bf16.msra.mxu0 0
    %124 = vmatprep.mubr.bf16.mxu0 0
    %125 = vmatmul.mubr.bf16.gmra.mrb[0].mxu0 %v90
    %v126 = vpop.f32.mrb[0].mxu0
    %v127 = vadd.f32 %v69, %v126
    %v128 = vpop.f32.mrb[0].mxu0
    %v129 = vpop.f32.mrb[0].mxu0
    %v130 = vadd.f32 %v69, %v129
    %v131 = vpop.f32.mrb[0].mxu0
    %132 = vdwg.mxu0
    %v133 = vmax.f32 %v127, 0.0
    %v134 = vmax.f32 %v130, 0.0
    %v135 = vld [vmem:[%s1] sm:$0xff]
    %v136 = vld [vmem:[%s1 + $0x8] sm:$0xff]
    %v137 = vadd.f32 %v133, %v135
    %v138 = vadd.f32 %v134, %v136
    %v139 = vld [vmem:[%s2] sm:$0xf]
    %v140 = vld [vmem:[%s2 + $0x4] sm:$0xf]
    %v141 = vld [vmem:[%s2 + $0x8] sm:$0xf]
    %v142 = vld [vmem:[%s2 + $0xc] sm:$0xf]
    %v143 = vpack.c.bf16 %v138, %v137
    %v148 = vunpack.c.l.b16 %v139
    %v149 = vunpack.c.l.b16 %v140
    %v150 = vunpack.c.l.b16 %v141
    %v151 = vunpack.c.l.b16 %v142
    %v152 = vpack.c.b16 %v149, %v148
    %v153 = vpack.c.b16 %v151, %v150
    %vm154 = vcmask 130048
    %v156 = vsel %vm154, %v152, 0
    %v159 = vsel %vm154, %v153, 0
    %161 = vmatprep.subr.bf16.mxu0 0
    %162 = vmatpush1.bf16.msra.mxu0 %v143
    %163 = vmatprep.subr.bf16.mxu0 0
    %164 = vmatpush1.bf16.msra.mxu0 0
    %165 = vmatprep.subr.bf16.mxu0 0
    %166 = vmatpush1.bf16.msra.mxu0 0
    %167 = vmatprep.subr.bf16.mxu0 0
    %168 = vmatpush1.bf16.msra.mxu0 0
    %169 = vmatprep.subr.bf16.mxu0 0
    %170 = vmatpush1.bf16.msra.mxu0 0
    %171 = vmatprep.subr.bf16.mxu0 0
    %172 = vmatpush1.bf16.msra.mxu0 0
    %173 = vmatprep.subr.bf16.mxu0 0
    %174 = vmatpush1.bf16.msra.mxu0 0
    %175 = vmatprep.subr.bf16.mxu0 0
    %176 = vmatpush1.bf16.msra.mxu0 0
    %177 = vmatprep.subr.bf16.mxu0 0
    %178 = vmatpush1.bf16.msra.mxu0 0
    %179 = vmatprep.subr.bf16.mxu0 0
    %180 = vmatpush1.bf16.msra.mxu0 0
    %181 = vmatprep.subr.bf16.mxu0 0
    %182 = vmatpush1.bf16.msra.mxu0 0
    %183 = vmatprep.subr.bf16.mxu0 0
    %184 = vmatpush1.bf16.msra.mxu0 0
    %185 = vmatprep.subr.bf16.mxu0 0
    %186 = vmatpush1.bf16.msra.mxu0 0
    %187 = vmatprep.subr.bf16.mxu0 0
    %188 = vmatpush1.bf16.msra.mxu0 0
    %189 = vmatprep.subr.bf16.mxu0 0
    %190 = vmatpush1.bf16.msra.mxu0 0
    %191 = vmatprep.subr.bf16.mxu0 0
    %192 = vmatpush1.bf16.msra.mxu0 0
    %193 = vmatprep.mubr.bf16.mxu0 0
    %194 = vmatmul.mubr.bf16.gmra.mrb[0].mxu0 %v156
    %v195 = vpop.f32.mrb[0].mxu0
    %v196 = vadd.f32 0.0, %v195
    %v197 = vpop.f32.mrb[0].mxu0
    %v198 = vpop.f32.mrb[0].mxu0
    %v199 = vadd.f32 0.0, %v198
    %v200 = vpop.f32.mrb[0].mxu0
    %201 = vmatprep.mubr.bf16.mxu0 0
    %202 = vmatmul.mubr.bf16.gmra.mrb[0].mxu0 %v159
    %v203 = vpop.f32.mrb[0].mxu0
    %v204 = vadd.f32 0.0, %v203
    %v205 = vpop.f32.mrb[0].mxu0
    %v206 = vpop.f32.mrb[0].mxu0
    %v207 = vadd.f32 0.0, %v206
    %v208 = vpop.f32.mrb[0].mxu0
    %209 = vdwg.mxu0
    %v210 = vpack.c.bf16 %v199, %v196
    %v211 = vpack.c.bf16 %v207, %v204
    %v212 = vld [vmem:[%s3] sm:$0xff]
    %v213 = vld [vmem:[%s3 + $0x8] sm:$0xff]
    %v214 = vld [vmem:[%s3 + $0x10] sm:$0xff]
    %v215 = vld [vmem:[%s3 + $0x18] sm:$0xff]
    %v216 = vld [vmem:[%s4] sm:$0xf]
    %v217 = vld [vmem:[%s4 + $0x4] sm:$0xf]
    %v218 = vld [vmem:[%s4 + $0x8] sm:$0xf]
    %v219 = vld [vmem:[%s4 + $0xc] sm:$0xf]
    %v220 = vld [vmem:[%s7] sm:$0xf]
    %v221 = vld [vmem:[%s7 + $0x4] sm:$0xf]
    %v222 = vld [vmem:[%s7 + $0x8] sm:$0xf]
    %v223 = vld [vmem:[%s7 + $0xc] sm:$0xf]
    %v224 = vld [vmem:[%s7 + $0x10] sm:$0xf]
    %v225 = vld [vmem:[%s7 + $0x14] sm:$0xf]
    %v226 = vld [vmem:[%s7 + $0x18] sm:$0xf]
    %v227 = vld [vmem:[%s7 + $0x1c] sm:$0xf]
    %v228 = vld [vmem:[%s7 + $0x20] sm:$0xf]
    %v229 = vld [vmem:[%s7 + $0x24] sm:$0xf]
    %v230 = vld [vmem:[%s7 + $0x28] sm:$0xf]
    %v231 = vld [vmem:[%s7 + $0x2c] sm:$0xf]
    %v232 = vld [vmem:[%s7 + $0x30] sm:$0xf]
    %v233 = vld [vmem:[%s7 + $0x34] sm:$0xf]
    %v234 = vld [vmem:[%s7 + $0x38] sm:$0xf]
    %v235 = vld [vmem:[%s7 + $0x3c] sm:$0xf]
    %v236 = vld [vmem:[%s8] sm:$0x1]
    %v238 = vlaneseq
    %v239 = vshrl.u32 %v238, 7
    %v240 = vsub.s32 0, %v239
    %v241 = vrot.slane %v236, %v240
    %v247 = vunpack.c.l.b16 %v216
    %v248 = vunpack.c.l.b16 %v217
    %v249 = vunpack.c.l.b16 %v218
    %v250 = vunpack.c.l.b16 %v219
    %v251 = vpack.c.b16 %v248, %v247
    %v252 = vpack.c.b16 %v250, %v249
    %v271 = vunpack.c.l.b16 %v220
    %v272 = vunpack.c.l.b16 %v221
    %v273 = vunpack.c.l.b16 %v222
    %v274 = vunpack.c.l.b16 %v223
    %v275 = vunpack.c.l.b16 %v224
    %v276 = vunpack.c.l.b16 %v225
    %v277 = vunpack.c.l.b16 %v226
    %v278 = vunpack.c.l.b16 %v227
    %v279 = vunpack.c.l.b16 %v228
    %v280 = vunpack.c.l.b16 %v229
    %v281 = vunpack.c.l.b16 %v230
    %v282 = vunpack.c.l.b16 %v231
    %v283 = vunpack.c.l.b16 %v232
    %v284 = vunpack.c.l.b16 %v233
    %v285 = vunpack.c.l.b16 %v234
    %v286 = vunpack.c.l.b16 %v235
    %v287 = vpack.c.b16 %v272, %v271
    %v288 = vpack.c.b16 %v274, %v273
    %v289 = vpack.c.b16 %v276, %v275
    %v290 = vpack.c.b16 %v278, %v277
    %v291 = vpack.c.b16 %v280, %v279
    %v292 = vpack.c.b16 %v282, %v281
    %v293 = vpack.c.b16 %v284, %v283
    %v294 = vpack.c.b16 %v286, %v285
    %303 = vmatprep.subr.bf16.mxu0 0
    %304 = vmatpush1.bf16.msra.mxu0 %v287
    %305 = vmatprep.subr.bf16.mxu0 0
    %306 = vmatpush1.bf16.msra.mxu0 %v288
    %307 = vmatprep.subr.bf16.mxu0 0
    %308 = vmatpush1.bf16.msra.mxu0 %v289
    %309 = vmatprep.subr.bf16.mxu0 0
    %310 = vmatpush1.bf16.msra.mxu0 %v290
    %311 = vmatprep.subr.bf16.mxu0 0
    %312 = vmatpush1.bf16.msra.mxu0 %v291
    %313 = vmatprep.subr.bf16.mxu0 0
    %314 = vmatpush1.bf16.msra.mxu0 %v292
    %315 = vmatprep.subr.bf16.mxu0 0
    %316 = vmatpush1.bf16.msra.mxu0 %v293
    %317 = vmatprep.subr.bf16.mxu0 0
    %318 = vmatpush1.bf16.msra.mxu0 %v294
    %319 = vmatprep.subr.bf16.mxu0 0
    %320 = vmatpush1.bf16.msra.mxu0 0
    %321 = vmatprep.subr.bf16.mxu0 0
    %322 = vmatpush1.bf16.msra.mxu0 0
    %323 = vmatprep.subr.bf16.mxu0 0
    %324 = vmatpush1.bf16.msra.mxu0 0
    %325 = vmatprep.subr.bf16.mxu0 0
    %326 = vmatpush1.bf16.msra.mxu0 0
    %327 = vmatprep.subr.bf16.mxu0 0
    %328 = vmatpush1.bf16.msra.mxu0 0
    %329 = vmatprep.subr.bf16.mxu0 0
    %330 = vmatpush1.bf16.msra.mxu0 0
    %331 = vmatprep.subr.bf16.mxu0 0
    %332 = vmatpush1.bf16.msra.mxu0 0
    %333 = vmatprep.subr.bf16.mxu0 0
    %334 = vmatpush1.bf16.msra.mxu0 0
    %335 = vmatprep.mubr.bf16.mxu0 0
    %336 = vmatmul.mubr.bf16.gmra.mrb[0].mxu0 %v251
    %v337 = vpop.f32.mrb[0].mxu0
    %v338 = vadd.f32 %v241, %v337
    %v339 = vpop.f32.mrb[0].mxu0
    %v340 = vpop.f32.mrb[0].mxu0
    %v341 = vadd.f32 %v241, %v340
    %v342 = vpop.f32.mrb[0].mxu0
    %343 = vmatprep.mubr.bf16.mxu0 0
    %344 = vmatmul.mubr.bf16.gmra.mrb[0].mxu0 %v252
    %v345 = vpop.f32.mrb[0].mxu0
    %v346 = vadd.f32 %v241, %v345
    %v347 = vpop.f32.mrb[0].mxu0
    %v348 = vpop.f32.mrb[0].mxu0
    %v349 = vadd.f32 %v241, %v348
    %v350 = vpop.f32.mrb[0].mxu0
    %351 = vdwg.mxu0
    %v352 = vmax.f32 %v338, 0.0
    %v353 = vmax.f32 %v341, 0.0
    %v354 = vmax.f32 %v346, 0.0
    %v355 = vmax.f32 %v349, 0.0
    %v356 = vlaneseq
    %v357 = vshrl.u32 %v356, 7
    %v358 = vadd.s32 %v357, 8
    %v359 = vadd.s32 %v357, 16
    %v360 = vadd.s32 %v357, 24
    %v361 = vand.u32 %v357, 15
    %v362 = vand.u32 %v358, 15
    %v363 = vand.u32 %v359, 15
    %v364 = vand.u32 %v360, 15
    %vm365 = vcmp.eq.s32.totalorder %v361, 0
    %vm366 = vcmp.eq.s32.totalorder %v362, 0
    %vm367 = vcmp.eq.s32.totalorder %v363, 0
    %vm368 = vcmp.eq.s32.totalorder %v364, 0
    %vm369 = vcmp.eq.s32.totalorder %v361, 15
    %vm370 = vcmp.eq.s32.totalorder %v362, 15
    %vm371 = vcmp.eq.s32.totalorder %v363, 15
    %vm372 = vcmp.eq.s32.totalorder %v364, 15
    %v373 = vld [vmem:[%s10] sm:$0xf]
    %v374 = vld [vmem:[%s10 + $0x4] sm:$0xf]
    %v375 = vld [vmem:[%s10 + $0x8] sm:$0xf]
    %v376 = vld [vmem:[%s10 + $0xc] sm:$0xf]
    %v377 = vld [vmem:[%s11] sm:$0x1]
    %v379 = vlaneseq
    %v380 = vshrl.u32 %v379, 7
    %v381 = vsub.s32 0, %v380
    %v382 = vrot.slane %v377, %v381
    %v388 = vunpack.c.l.b16 %v373
    %v389 = vunpack.c.l.b16 %v374
    %v390 = vunpack.c.l.b16 %v375
    %v391 = vunpack.c.l.b16 %v376
    %v392 = vpack.c.b16 %v389, %v388
    %v393 = vpack.c.b16 %v391, %v390
    %v397 = vsel %vm88, %v210, 0
    %v400 = vsel %vm88, %v211, 0
    %402 = vmatprep.subr.bf16.mxu0 0
    %403 = vmatpush1.bf16.msra.mxu0 %v392
    %404 = vmatprep.subr.bf16.mxu0 0
    %405 = vmatpush1.bf16.msra.mxu0 %v393
    %406 = vmatprep.subr.bf16.mxu0 0
    %407 = vmatpush1.bf16.msra.mxu0 0
    %408 = vmatprep.subr.bf16.mxu0 0
    %409 = vmatpush1.bf16.msra.mxu0 0
    %410 = vmatprep.subr.bf16.mxu0 0
    %411 = vmatpush1.bf16.msra.mxu0 0
    %412 = vmatprep.subr.bf16.mxu0 0
    %413 = vmatpush1.bf16.msra.mxu0 0
    %414 = vmatprep.subr.bf16.mxu0 0
    %415 = vmatpush1.bf16.msra.mxu0 0
    %416 = vmatprep.subr.bf16.mxu0 0
    %417 = vmatpush1.bf16.msra.mxu0 0
    %418 = vmatprep.subr.bf16.mxu0 0
    %419 = vmatpush1.bf16.msra.mxu0 0
    %420 = vmatprep.subr.bf16.mxu0 0
    %421 = vmatpush1.bf16.msra.mxu0 0
    %422 = vmatprep.subr.bf16.mxu0 0
    %423 = vmatpush1.bf16.msra.mxu0 0
    %424 = vmatprep.subr.bf16.mxu0 0
    %425 = vmatpush1.bf16.msra.mxu0 0
    %426 = vmatprep.subr.bf16.mxu0 0
    %427 = vmatpush1.bf16.msra.mxu0 0
    %428 = vmatprep.subr.bf16.mxu0 0
    %429 = vmatpush1.bf16.msra.mxu0 0
    %430 = vmatprep.subr.bf16.mxu0 0
    %431 = vmatpush1.bf16.msra.mxu0 0
    %432 = vmatprep.subr.bf16.mxu0 0
    %433 = vmatpush1.bf16.msra.mxu0 0
    %434 = vmatprep.mubr.bf16.mxu0 0
    %435 = vmatmul.mubr.bf16.gmra.mrb[0].mxu0 %v397
    %v436 = vpop.f32.mrb[0].mxu0
    %v437 = vadd.f32 %v382, %v436
    %v438 = vpop.f32.mrb[0].mxu0
    %v439 = vpop.f32.mrb[0].mxu0
    %v440 = vadd.f32 %v382, %v439
    %v441 = vpop.f32.mrb[0].mxu0
    %442 = vmatprep.mubr.bf16.mxu0 0
    %443 = vmatmul.mubr.bf16.gmra.mrb[0].mxu0 %v400
    %v444 = vpop.f32.mrb[0].mxu0
    %v445 = vadd.f32 %v382, %v444
    %v446 = vpop.f32.mrb[0].mxu0
    %v447 = vpop.f32.mrb[0].mxu0
    %v448 = vadd.f32 %v382, %v447
    %v449 = vpop.f32.mrb[0].mxu0
    %450 = vdwg.mxu0
    %s451 = scalar_lea.vmem %s10, 16
    %v452 = vld [vmem:[%s451] sm:$0xf]
    %v453 = vld [vmem:[%s451 + $0x4] sm:$0xf]
    %v454 = vld [vmem:[%s451 + $0x8] sm:$0xf]
    %v455 = vld [vmem:[%s451 + $0xc] sm:$0xf]
    %s456 = scalar_lea.vmem %s11, 1
    %v457 = vld [vmem:[%s456] sm:$0x1]
    %v459 = vlaneseq
    %v460 = vshrl.u32 %v459, 7
    %v461 = vsub.s32 0, %v460
    %v462 = vrot.slane %v457, %v461
    %v468 = vunpack.c.l.b16 %v452
    %v469 = vunpack.c.l.b16 %v453
    %v470 = vunpack.c.l.b16 %v454
    %v471 = vunpack.c.l.b16 %v455
    %v472 = vpack.c.b16 %v469, %v468
    %v473 = vpack.c.b16 %v471, %v470
    %476 = vmatprep.subr.bf16.mxu0 0
    %477 = vmatpush1.bf16.msra.mxu0 %v472
    %478 = vmatprep.subr.bf16.mxu0 0
    %479 = vmatpush1.bf16.msra.mxu0 %v473
    %480 = vmatprep.subr.bf16.mxu0 0
    %481 = vmatpush1.bf16.msra.mxu0 0
    %482 = vmatprep.subr.bf16.mxu0 0
    %483 = vmatpush1.bf16.msra.mxu0 0
    %484 = vmatprep.subr.bf16.mxu0 0
    %485 = vmatpush1.bf16.msra.mxu0 0
    %486 = vmatprep.subr.bf16.mxu0 0
    %487 = vmatpush1.bf16.msra.mxu0 0
    %488 = vmatprep.subr.bf16.mxu0 0
    %489 = vmatpush1.bf16.msra.mxu0 0
    %490 = vmatprep.subr.bf16.mxu0 0
    %491 = vmatpush1.bf16.msra.mxu0 0
    %492 = vmatprep.subr.bf16.mxu0 0
    %493 = vmatpush1.bf16.msra.mxu0 0
    %494 = vmatprep.subr.bf16.mxu0 0
    %495 = vmatpush1.bf16.msra.mxu0 0
    %496 = vmatprep.subr.bf16.mxu0 0
    %497 = vmatpush1.bf16.msra.mxu0 0
    %498 = vmatprep.subr.bf16.mxu0 0
    %499 = vmatpush1.bf16.msra.mxu0 0
    %500 = vmatprep.subr.bf16.mxu0 0
    %501 = vmatpush1.bf16.msra.mxu0 0
    %502 = vmatprep.subr.bf16.mxu0 0
    %503 = vmatpush1.bf16.msra.mxu0 0
    %504 = vmatprep.subr.bf16.mxu0 0
    %505 = vmatpush1.bf16.msra.mxu0 0
    %506 = vmatprep.subr.bf16.mxu0 0
    %507 = vmatpush1.bf16.msra.mxu0 0
    %508 = vmatprep.mubr.bf16.mxu0 0
    %509 = vmatmul.mubr.bf16.gmra.mrb[0].mxu0 %v397
    %v510 = vpop.f32.mrb[0].mxu0
    %v511 = vadd.f32 %v462, %v510
    %v512 = vpop.f32.mrb[0].mxu0
    %v513 = vpop.f32.mrb[0].mxu0
    %v514 = vadd.f32 %v462, %v513
    %v515 = vpop.f32.mrb[0].mxu0
    %516 = vmatprep.mubr.bf16.mxu0 0
    %517 = vmatmul.mubr.bf16.gmra.mrb[0].mxu0 %v400
    %v518 = vpop.f32.mrb[0].mxu0
    %v519 = vadd.f32 %v462, %v518
    %v520 = vpop.f32.mrb[0].mxu0
    %v521 = vpop.f32.mrb[0].mxu0
    %v522 = vadd.f32 %v462, %v521
    %v523 = vpop.f32.mrb[0].mxu0
    %524 = vdwg.mxu0
    %v525 = vadd.f32 %v352, %v212
    %v526 = vadd.f32 %v353, %v213
    %v527 = vadd.f32 %v354, %v214
    %v528 = vadd.f32 %v355, %v215
    %v529 = vrot.slane %v525, 7
    %v530 = vrot.slane %v526, 7
    %v531 = vrot.slane %v527, 7
    %v532 = vrot.slane %v528, 7
    %vm533 = vcmp.lt.s32.totalorder %v357, 1
    %v534 = vsel %vm533, %v531, %v532
    %v535 = vsel %vm533, %v530, %v531
    %v536 = vsel %vm533, %v529, %v530
    %v537 = vsel %vm533, %v532, %v529
    %v538 = vsel %vm365, 1, 0
    %v539 = vsel %vm366, 1, 0
    %v540 = vsel %vm367, 1, 0
    %v541 = vsel %vm368, 1, 0
    %vm542 = vcmp.eq.s32.totalorder %v538, 1
    %vm543 = vcmp.eq.s32.totalorder %v539, 1
    %vm544 = vcmp.eq.s32.totalorder %v540, 1
    %vm545 = vcmp.eq.s32.totalorder %v541, 1
    %v546 = vsel %vm542, 0.0, %v537
    %v547 = vsel %vm543, 0.0, %v536
    %v548 = vsel %vm544, 0.0, %v535
    %v549 = vsel %vm545, 0.0, %v534
    %v550 = vrot.slane %v525, 1
    %v551 = vrot.slane %v526, 1
    %v552 = vrot.slane %v527, 1
    %v553 = vrot.slane %v528, 1
    %vm554 = vcmp.lt.s32.totalorder %v357, 7
    %v555 = vsel %vm554, %v552, %v553
    %v556 = vsel %vm554, %v551, %v552
    %v557 = vsel %vm554, %v550, %v551
    %v558 = vsel %vm554, %v553, %v550
    %v559 = vsel %vm369, 1, 0
    %v560 = vsel %vm370, 1, 0
    %v561 = vsel %vm371, 1, 0
    %v562 = vsel %vm372, 1, 0
    %vm563 = vcmp.eq.s32.totalorder %v559, 1
    %vm564 = vcmp.eq.s32.totalorder %v560, 1
    %vm565 = vcmp.eq.s32.totalorder %v561, 1
    %vm566 = vcmp.eq.s32.totalorder %v562, 1
    %v567 = vsel %vm563, 0.0, %v557
    %v568 = vsel %vm564, 0.0, %v556
    %v569 = vsel %vm565, 0.0, %v555
    %v570 = vsel %vm566, 0.0, %v558
    %575 = vrot.lane.b32.xlu0 %v525, 32
    %v576 = vpop.permute.xlu0 %575
    %577 = vrot.lane.b32.xlu0 %v526, 32
    %v578 = vpop.permute.xlu0 %577
    %579 = vrot.lane.b32.xlu0 %v527, 32
    %v580 = vpop.permute.xlu0 %579
    %581 = vrot.lane.b32.xlu0 %v528, 32
    %v582 = vpop.permute.xlu0 %581
    %591 = vrot.lane.b32.xlu0 %v567, 64
    %v592 = vpop.permute.xlu0 %591
    %593 = vrot.lane.b32.xlu0 %v568, 64
    %v594 = vpop.permute.xlu0 %593
    %595 = vrot.lane.b32.xlu0 %v569, 64
    %v596 = vpop.permute.xlu0 %595
    %597 = vrot.lane.b32.xlu0 %v570, 64
    %v598 = vpop.permute.xlu0 %597
    %v603 = vsel %vm88, %v546, %v576
    %v604 = vsel %vm88, %v547, %v578
    %v605 = vsel %vm88, %v548, %v580
    %v606 = vsel %vm88, %v549, %v582
    %vm607 = vcmask 523264
    %v608 = vsel %vm607, %v603, %v592
    %v609 = vsel %vm607, %v604, %v594
    %v610 = vsel %vm607, %v605, %v596
    %v611 = vsel %vm607, %v606, %v598
    %v612 = vpack.c.bf16 %v609, %v608
    %v613 = vpack.c.bf16 %v611, %v610
    %v614 = vld [vmem:[%s9] sm:$0xf]
    %v615 = vld [vmem:[%s9 + $0x4] sm:$0xf]
    %v616 = vld [vmem:[%s9 + $0x8] sm:$0xf]
    %v617 = vld [vmem:[%s9 + $0xc] sm:$0xf]
    %v618 = vld [vmem:[%s9 + $0x10] sm:$0xf]
    %v619 = vld [vmem:[%s9 + $0x14] sm:$0xf]
    %v620 = vld [vmem:[%s9 + $0x18] sm:$0xf]
    %v621 = vld [vmem:[%s9 + $0x1c] sm:$0xf]
    %v622 = vld [vmem:[%s9 + $0x20] sm:$0xf]
    %v623 = vld [vmem:[%s9 + $0x24] sm:$0xf]
    %v624 = vld [vmem:[%s9 + $0x28] sm:$0xf]
    %v625 = vld [vmem:[%s9 + $0x2c] sm:$0xf]
    %v638 = vunpack.c.l.b16 %v614
    %v639 = vunpack.c.l.b16 %v615
    %v640 = vunpack.c.l.b16 %v616
    %v641 = vunpack.c.l.b16 %v617
    %v642 = vunpack.c.l.b16 %v618
    %v643 = vunpack.c.l.b16 %v619
    %v644 = vunpack.c.l.b16 %v620
    %v645 = vunpack.c.l.b16 %v621
    %v646 = vunpack.c.l.b16 %v622
    %v647 = vunpack.c.l.b16 %v623
    %v648 = vunpack.c.l.b16 %v624
    %v649 = vunpack.c.l.b16 %v625
    %v650 = vpack.c.b16 %v639, %v638
    %v651 = vpack.c.b16 %v641, %v640
    %v652 = vpack.c.b16 %v643, %v642
    %v653 = vpack.c.b16 %v645, %v644
    %v654 = vpack.c.b16 %v647, %v646
    %v655 = vpack.c.b16 %v649, %v648
    %vm662 = vcmask 785408
    %v664 = vsel %vm662, %v612, 0
    %v667 = vsel %vm662, %v613, 0
    %669 = vmatprep.subr.bf16.mxu0 0
    %670 = vmatpush1.bf16.msra.mxu0 %v650
    %671 = vmatprep.subr.bf16.mxu0 0
    %672 = vmatpush1.bf16.msra.mxu0 %v651
    %673 = vmatprep.subr.bf16.mxu0 0
    %674 = vmatpush1.bf16.msra.mxu0 %v652
    %675 = vmatprep.subr.bf16.mxu0 0
    %676 = vmatpush1.bf16.msra.mxu0 %v653
    %677 = vmatprep.subr.bf16.mxu0 0
    %678 = vmatpush1.bf16.msra.mxu0 %v654
    %679 = vmatprep.subr.bf16.mxu0 0
    %680 = vmatpush1.bf16.msra.mxu0 %v655
    %681 = vmatprep.subr.bf16.mxu0 0
    %682 = vmatpush1.bf16.msra.mxu0 0
    %683 = vmatprep.subr.bf16.mxu0 0
    %684 = vmatpush1.bf16.msra.mxu0 0
    %685 = vmatprep.subr.bf16.mxu0 0
    %686 = vmatpush1.bf16.msra.mxu0 0
    %687 = vmatprep.subr.bf16.mxu0 0
    %688 = vmatpush1.bf16.msra.mxu0 0
    %689 = vmatprep.subr.bf16.mxu0 0
    %690 = vmatpush1.bf16.msra.mxu0 0
    %691 = vmatprep.subr.bf16.mxu0 0
    %692 = vmatpush1.bf16.msra.mxu0 0
    %693 = vmatprep.subr.bf16.mxu0 0
    %694 = vmatpush1.bf16.msra.mxu0 0
    %695 = vmatprep.subr.bf16.mxu0 0
    %696 = vmatpush1.bf16.msra.mxu0 0
    %697 = vmatprep.subr.bf16.mxu0 0
    %698 = vmatpush1.bf16.msra.mxu0 0
    %699 = vmatprep.subr.bf16.mxu0 0
    %700 = vmatpush1.bf16.msra.mxu0 0
    %701 = vmatprep.mubr.bf16.mxu0 0
    %702 = vmatmul.mubr.bf16.gmra.mrb[0].mxu0 %v664
    %v703 = vpop.f32.mrb[0].mxu0
    %v704 = vadd.f32 %v437, %v703
    %v705 = vpop.f32.mrb[0].mxu0
    %v706 = vpop.f32.mrb[0].mxu0
    %v707 = vadd.f32 %v440, %v706
    %v708 = vpop.f32.mrb[0].mxu0
    %709 = vmatprep.mubr.bf16.mxu0 0
    %710 = vmatmul.mubr.bf16.gmra.mrb[0].mxu0 %v667
    %v711 = vpop.f32.mrb[0].mxu0
    %v712 = vadd.f32 %v445, %v711
    %v713 = vpop.f32.mrb[0].mxu0
    %v714 = vpop.f32.mrb[0].mxu0
    %v715 = vadd.f32 %v448, %v714
    %v716 = vpop.f32.mrb[0].mxu0
    %717 = vdwg.mxu0
    %v718 = vtanh.pop %v704
    %v719 = vtanh.pop %v707
    %v720 = vtanh.pop %v712
    %v721 = vtanh.pop %v715
    %v722 = vxor.u32 %v704, 2147483648
    %v723 = vxor.u32 %v707, 2147483648
    %v724 = vxor.u32 %v712, 2147483648
    %v725 = vxor.u32 %v715, 2147483648
    %v726 = vmul.f32 %v722, 1.442695
    %v727 = vpow.pop %v726
    %v728 = vmul.f32 %v723, 1.442695
    %v729 = vpow.pop %v728
    %v730 = vmul.f32 %v724, 1.442695
    %v731 = vpow.pop %v730
    %v732 = vmul.f32 %v725, 1.442695
    %v733 = vpow.pop %v732
    %v734 = vadd.f32 %v727, 1.0
    %v735 = vadd.f32 %v729, 1.0
    %v736 = vadd.f32 %v731, 1.0
    %v737 = vadd.f32 %v733, 1.0
    %v738 = vrcp.pop %v734
    %v739 = vmul.f32 1.0, %v738
    %v740 = vrcp.pop %v735
    %v741 = vmul.f32 1.0, %v740
    %v742 = vrcp.pop %v736
    %v743 = vmul.f32 1.0, %v742
    %v744 = vrcp.pop %v737
    %v745 = vmul.f32 1.0, %v744
    %750 = vrot.lane.b32.xlu0 %v739, 96
    %v751 = vpop.permute.xlu0 %750
    %752 = vrot.lane.b32.xlu0 %v741, 96
    %v753 = vpop.permute.xlu0 %752
    %754 = vrot.lane.b32.xlu0 %v743, 96
    %v755 = vpop.permute.xlu0 %754
    %756 = vrot.lane.b32.xlu0 %v745, 96
    %v757 = vpop.permute.xlu0 %756
    %v762 = vmul.f32 %v718, %v751
    %v763 = vmul.f32 %v719, %v753
    %v764 = vmul.f32 %v720, %v755
    %v765 = vmul.f32 %v721, %v757
    %v766 = vpack.c.bf16 %v763, %v762
    %v767 = vpack.c.bf16 %v765, %v764
    %v768 = vld [vmem:[%s12] sm:$0xf]
    %v769 = vld [vmem:[%s12 + $0x4] sm:$0xf]
    %v770 = vld [vmem:[%s12 + $0x8] sm:$0xf]
    %v771 = vld [vmem:[%s12 + $0xc] sm:$0xf]
    %v776 = vunpack.c.l.b16 %v768
    %v777 = vunpack.c.l.b16 %v769
    %v778 = vunpack.c.l.b16 %v770
    %v779 = vunpack.c.l.b16 %v771
    %v780 = vpack.c.b16 %v777, %v776
    %v781 = vpack.c.b16 %v779, %v778
    %v785 = vsel %vm88, %v766, 0
    %v788 = vsel %vm88, %v767, 0
    %790 = vmatprep.subr.bf16.mxu0 0
    %791 = vmatpush1.bf16.msra.mxu0 %v780
    %792 = vmatprep.subr.bf16.mxu0 0
    %793 = vmatpush1.bf16.msra.mxu0 %v781
    %794 = vmatprep.subr.bf16.mxu0 0
    %795 = vmatpush1.bf16.msra.mxu0 0
    %796 = vmatprep.subr.bf16.mxu0 0
    %797 = vmatpush1.bf16.msra.mxu0 0
    %798 = vmatprep.subr.bf16.mxu0 0
    %799 = vmatpush1.bf16.msra.mxu0 0
    %800 = vmatprep.subr.bf16.mxu0 0
    %801 = vmatpush1.bf16.msra.mxu0 0
    %802 = vmatprep.subr.bf16.mxu0 0
    %803 = vmatpush1.bf16.msra.mxu0 0
    %804 = vmatprep.subr.bf16.mxu0 0
    %805 = vmatpush1.bf16.msra.mxu0 0
    %806 = vmatprep.subr.bf16.mxu0 0
    %807 = vmatpush1.bf16.msra.mxu0 0
    %808 = vmatprep.subr.bf16.mxu0 0
    %809 = vmatpush1.bf16.msra.mxu0 0
    %810 = vmatprep.subr.bf16.mxu0 0
    %811 = vmatpush1.bf16.msra.mxu0 0
    %812 = vmatprep.subr.bf16.mxu0 0
    %813 = vmatpush1.bf16.msra.mxu0 0
    %814 = vmatprep.subr.bf16.mxu0 0
    %815 = vmatpush1.bf16.msra.mxu0 0
    %816 = vmatprep.subr.bf16.mxu0 0
    %817 = vmatpush1.bf16.msra.mxu0 0
    %818 = vmatprep.subr.bf16.mxu0 0
    %819 = vmatpush1.bf16.msra.mxu0 0
    %820 = vmatprep.subr.bf16.mxu0 0
    %821 = vmatpush1.bf16.msra.mxu0 0
    %822 = vmatprep.mubr.bf16.mxu0 0
    %823 = vmatmul.mubr.bf16.gmra.mrb[0].mxu0 %v785
    %v824 = vpop.f32.mrb[0].mxu0
    %v825 = vadd.f32 0.0, %v824
    %v826 = vpop.f32.mrb[0].mxu0
    %v827 = vpop.f32.mrb[0].mxu0
    %v828 = vadd.f32 0.0, %v827
    %v829 = vpop.f32.mrb[0].mxu0
    %830 = vmatprep.mubr.bf16.mxu0 0
    %831 = vmatmul.mubr.bf16.gmra.mrb[0].mxu0 %v788
    %v832 = vpop.f32.mrb[0].mxu0
    %v833 = vadd.f32 0.0, %v832
    %v834 = vpop.f32.mrb[0].mxu0
    %v835 = vpop.f32.mrb[0].mxu0
    %v836 = vadd.f32 0.0, %v835
    %v837 = vpop.f32.mrb[0].mxu0
    %838 = vdwg.mxu0
    %v839 = vadd.f32 %v352, %v825
    %v840 = vadd.f32 %v353, %v828
    %v841 = vadd.f32 %v354, %v833
    %v842 = vadd.f32 %v355, %v836
    %v843 = vmul.f32 %v839, 0.70710677
    %v844 = vmul.f32 %v840, 0.70710677
    %v845 = vmul.f32 %v841, 0.70710677
    %v846 = vmul.f32 %v842, 0.70710677
    %v847 = vadd.f32 %v825, 0.0
    %v848 = vadd.f32 %v828, 0.0
    %v849 = vadd.f32 %v833, 0.0
    %v850 = vadd.f32 %v836, 0.0
    %v851 = vadd.f32 %v843, %v212
    %v852 = vadd.f32 %v844, %v213
    %v853 = vadd.f32 %v845, %v214
    %v854 = vadd.f32 %v846, %v215
    %v855 = vrot.slane %v851, 7
    %v856 = vrot.slane %v852, 7
    %v857 = vrot.slane %v853, 7
    %v858 = vrot.slane %v854, 7
    %v859 = vsel %vm533, %v857, %v858
    %v860 = vsel %vm533, %v856, %v857
    %v861 = vsel %vm533, %v855, %v856
    %v862 = vsel %vm533, %v858, %v855
    %v863 = vsel %vm542, 0.0, %v862
    %v864 = vsel %vm543, 0.0, %v861
    %v865 = vsel %vm544, 0.0, %v860
    %v866 = vsel %vm545, 0.0, %v859
    %v867 = vrot.slane %v851, 1
    %v868 = vrot.slane %v852, 1
    %v869 = vrot.slane %v853, 1
    %v870 = vrot.slane %v854, 1
    %v871 = vsel %vm554, %v869, %v870
    %v872 = vsel %vm554, %v868, %v869
    %v873 = vsel %vm554, %v867, %v868
    %v874 = vsel %vm554, %v870, %v867
    %v875 = vsel %vm563, 0.0, %v873
    %v876 = vsel %vm564, 0.0, %v872
    %v877 = vsel %vm565, 0.0, %v871
    %v878 = vsel %vm566, 0.0, %v874
    %883 = vrot.lane.b32.xlu0 %v851, 32
    %v884 = vpop.permute.xlu0 %883
    %885 = vrot.lane.b32.xlu0 %v852, 32
    %v886 = vpop.permute.xlu0 %885
    %887 = vrot.lane.b32.xlu0 %v853, 32
    %v888 = vpop.permute.xlu0 %887
    %889 = vrot.lane.b32.xlu0 %v854, 32
    %v890 = vpop.permute.xlu0 %889
    %899 = vrot.lane.b32.xlu0 %v875, 64
    %v900 = vpop.permute.xlu0 %899
    %901 = vrot.lane.b32.xlu0 %v876, 64
    %v902 = vpop.permute.xlu0 %901
    %903 = vrot.lane.b32.xlu0 %v877, 64
    %v904 = vpop.permute.xlu0 %903
    %905 = vrot.lane.b32.xlu0 %v878, 64
    %v906 = vpop.permute.xlu0 %905
    %v911 = vsel %vm88, %v863, %v884
    %v912 = vsel %vm88, %v864, %v886
    %v913 = vsel %vm88, %v865, %v888
    %v914 = vsel %vm88, %v866, %v890
    %v915 = vsel %vm607, %v911, %v900
    %v916 = vsel %vm607, %v912, %v902
    %v917 = vsel %vm607, %v913, %v904
    %v918 = vsel %vm607, %v914, %v906
    %v919 = vpack.c.bf16 %v916, %v915
    %v920 = vpack.c.bf16 %v918, %v917
    %s921 = scalar_lea.vmem %s9, 48
    %v922 = vld [vmem:[%s921] sm:$0xf]
    %v923 = vld [vmem:[%s921 + $0x4] sm:$0xf]
    %v924 = vld [vmem:[%s921 + $0x8] sm:$0xf]
    %v925 = vld [vmem:[%s921 + $0xc] sm:$0xf]
    %v926 = vld [vmem:[%s921 + $0x10] sm:$0xf]
    %v927 = vld [vmem:[%s921 + $0x14] sm:$0xf]
    %v928 = vld [vmem:[%s921 + $0x18] sm:$0xf]
    %v929 = vld [vmem:[%s921 + $0x1c] sm:$0xf]
    %v930 = vld [vmem:[%s921 + $0x20] sm:$0xf]
    %v931 = vld [vmem:[%s921 + $0x24] sm:$0xf]
    %v932 = vld [vmem:[%s921 + $0x28] sm:$0xf]
    %v933 = vld [vmem:[%s921 + $0x2c] sm:$0xf]
    %v946 = vunpack.c.l.b16 %v922
    %v947 = vunpack.c.l.b16 %v923
    %v948 = vunpack.c.l.b16 %v924
    %v949 = vunpack.c.l.b16 %v925
    %v950 = vunpack.c.l.b16 %v926
    %v951 = vunpack.c.l.b16 %v927
    %v952 = vunpack.c.l.b16 %v928
    %v953 = vunpack.c.l.b16 %v929
    %v954 = vunpack.c.l.b16 %v930
    %v955 = vunpack.c.l.b16 %v931
    %v956 = vunpack.c.l.b16 %v932
    %v957 = vunpack.c.l.b16 %v933
    %v958 = vpack.c.b16 %v947, %v946
    %v959 = vpack.c.b16 %v949, %v948
    %v960 = vpack.c.b16 %v951, %v950
    %v961 = vpack.c.b16 %v953, %v952
    %v962 = vpack.c.b16 %v955, %v954
    %v963 = vpack.c.b16 %v957, %v956
    %v971 = vsel %vm662, %v919, 0
    %v974 = vsel %vm662, %v920, 0
    %976 = vmatprep.subr.bf16.mxu0 0
    %977 = vmatpush1.bf16.msra.mxu0 %v958
    %978 = vmatprep.subr.bf16.mxu0 0
    %979 = vmatpush1.bf16.msra.mxu0 %v959
    %980 = vmatprep.subr.bf16.mxu0 0
    %981 = vmatpush1.bf16.msra.mxu0 %v960
    %982 = vmatprep.subr.bf16.mxu0 0
    %983 = vmatpush1.bf16.msra.mxu0 %v961
    %984 = vmatprep.subr.bf16.mxu0 0
    %985 = vmatpush1.bf16.msra.mxu0 %v962
    %986 = vmatprep.subr.bf16.mxu0 0
    %987 = vmatpush1.bf16.msra.mxu0 %v963
    %988 = vmatprep.subr.bf16.mxu0 0
    %989 = vmatpush1.bf16.msra.mxu0 0
    %990 = vmatprep.subr.bf16.mxu0 0
    %991 = vmatpush1.bf16.msra.mxu0 0
    %992 = vmatprep.subr.bf16.mxu0 0
    %993 = vmatpush1.bf16.msra.mxu0 0
    %994 = vmatprep.subr.bf16.mxu0 0
    %995 = vmatpush1.bf16.msra.mxu0 0
    %996 = vmatprep.subr.bf16.mxu0 0
    %997 = vmatpush1.bf16.msra.mxu0 0
    %998 = vmatprep.subr.bf16.mxu0 0
    %999 = vmatpush1.bf16.msra.mxu0 0
    %1000 = vmatprep.subr.bf16.mxu0 0
    %1001 = vmatpush1.bf16.msra.mxu0 0
    %1002 = vmatprep.subr.bf16.mxu0 0
    %1003 = vmatpush1.bf16.msra.mxu0 0
    %1004 = vmatprep.subr.bf16.mxu0 0
    %1005 = vmatpush1.bf16.msra.mxu0 0
    %1006 = vmatprep.subr.bf16.mxu0 0
    %1007 = vmatpush1.bf16.msra.mxu0 0
    %1008 = vmatprep.mubr.bf16.mxu0 0
    %1009 = vmatmul.mubr.bf16.gmra.mrb[0].mxu0 %v971
    %v1010 = vpop.f32.mrb[0].mxu0
    %v1011 = vadd.f32 %v511, %v1010
    %v1012 = vpop.f32.mrb[0].mxu0
    %v1013 = vpop.f32.mrb[0].mxu0
    %v1014 = vadd.f32 %v514, %v1013
    %v1015 = vpop.f32.mrb[0].mxu0
    %1016 = vmatprep.mubr.bf16.mxu0 0
    %1017 = vmatmul.mubr.bf16.gmra.mrb[0].mxu0 %v974
    %v1018 = vpop.f32.mrb[0].mxu0
    %v1019 = vadd.f32 %v519, %v1018
    %v1020 = vpop.f32.mrb[0].mxu0
    %v1021 = vpop.f32.mrb[0].mxu0
    %v1022 = vadd.f32 %v522, %v1021
    %v1023 = vpop.f32.mrb[0].mxu0
    %1024 = vdwg.mxu0
    %v1025 = vtanh.pop %v1011
    %v1026 = vtanh.pop %v1014
    %v1027 = vtanh.pop %v1019
    %v1028 = vtanh.pop %v1022
    %v1029 = vxor.u32 %v1011, 2147483648
    %v1030 = vxor.u32 %v1014, 2147483648
    %v1031 = vxor.u32 %v1019, 2147483648
    %v1032 = vxor.u32 %v1022, 2147483648
    %v1033 = vmul.f32 %v1029, 1.442695
    %v1034 = vpow.pop %v1033
    %v1035 = vmul.f32 %v1030, 1.442695
    %v1036 = vpow.pop %v1035
    %v1037 = vmul.f32 %v1031, 1.442695
    %v1038 = vpow.pop %v1037
    %v1039 = vmul.f32 %v1032, 1.442695
    %v1040 = vpow.pop %v1039
    %v1041 = vadd.f32 %v1034, 1.0
    %v1042 = vadd.f32 %v1036, 1.0
    %v1043 = vadd.f32 %v1038, 1.0
    %v1044 = vadd.f32 %v1040, 1.0
    %v1045 = vrcp.pop %v1041
    %v1046 = vmul.f32 1.0, %v1045
    %v1047 = vrcp.pop %v1042
    %v1048 = vmul.f32 1.0, %v1047
    %v1049 = vrcp.pop %v1043
    %v1050 = vmul.f32 1.0, %v1049
    %v1051 = vrcp.pop %v1044
    %v1052 = vmul.f32 1.0, %v1051
    %1057 = vrot.lane.b32.xlu0 %v1046, 96
    %v1058 = vpop.permute.xlu0 %1057
    %1059 = vrot.lane.b32.xlu0 %v1048, 96
    %v1060 = vpop.permute.xlu0 %1059
    %1061 = vrot.lane.b32.xlu0 %v1050, 96
    %v1062 = vpop.permute.xlu0 %1061
    %1063 = vrot.lane.b32.xlu0 %v1052, 96
    %v1064 = vpop.permute.xlu0 %1063
    %v1069 = vmul.f32 %v1025, %v1058
    %v1070 = vmul.f32 %v1026, %v1060
    %v1071 = vmul.f32 %v1027, %v1062
    %v1072 = vmul.f32 %v1028, %v1064
    %v1073 = vpack.c.bf16 %v1070, %v1069
    %v1074 = vpack.c.bf16 %v1072, %v1071
    %s1075 = scalar_lea.vmem %s12, 16
    %v1076 = vld [vmem:[%s1075] sm:$0xf]
    %v1077 = vld [vmem:[%s1075 + $0x4] sm:$0xf]
    %v1078 = vld [vmem:[%s1075 + $0x8] sm:$0xf]
    %v1079 = vld [vmem:[%s1075 + $0xc] sm:$0xf]
    %v1084 = vunpack.c.l.b16 %v1076
    %v1085 = vunpack.c.l.b16 %v1077
    %v1086 = vunpack.c.l.b16 %v1078
    %v1087 = vunpack.c.l.b16 %v1079
    %v1088 = vpack.c.b16 %v1085, %v1084
    %v1089 = vpack.c.b16 %v1087, %v1086
    %v1093 = vsel %vm88, %v1073, 0
    %v1096 = vsel %vm88, %v1074, 0
    %1098 = vmatprep.subr.bf16.mxu0 0
    %1099 = vmatpush1.bf16.msra.mxu0 %v1088
    %1100 = vmatprep.subr.bf16.mxu0 0
    %1101 = vmatpush1.bf16.msra.mxu0 %v1089
    %1102 = vmatprep.subr.bf16.mxu0 0
    %1103 = vmatpush1.bf16.msra.mxu0 0
    %1104 = vmatprep.subr.bf16.mxu0 0
    %1105 = vmatpush1.bf16.msra.mxu0 0
    %1106 = vmatprep.subr.bf16.mxu0 0
    %1107 = vmatpush1.bf16.msra.mxu0 0
    %1108 = vmatprep.subr.bf16.mxu0 0
    %1109 = vmatpush1.bf16.msra.mxu0 0
    %1110 = vmatprep.subr.bf16.mxu0 0
    %1111 = vmatpush1.bf16.msra.mxu0 0
    %1112 = vmatprep.subr.bf16.mxu0 0
    %1113 = vmatpush1.bf16.msra.mxu0 0
    %1114 = vmatprep.subr.bf16.mxu0 0
    %1115 = vmatpush1.bf16.msra.mxu0 0
    %1116 = vmatprep.subr.bf16.mxu0 0
    %1117 = vmatpush1.bf16.msra.mxu0 0
    %1118 = vmatprep.subr.bf16.mxu0 0
    %1119 = vmatpush1.bf16.msra.mxu0 0
    %1120 = vmatprep.subr.bf16.mxu0 0
    %1121 = vmatpush1.bf16.msra.mxu0 0
    %1122 = vmatprep.subr.bf16.mxu0 0
    %1123 = vmatpush1.bf16.msra.mxu0 0
    %1124 = vmatprep.subr.bf16.mxu0 0
    %1125 = vmatpush1.bf16.msra.mxu0 0
    %1126 = vmatprep.subr.bf16.mxu0 0
    %1127 = vmatpush1.bf16.msra.mxu0 0
    %1128 = vmatprep.subr.bf16.mxu0 0
    %1129 = vmatpush1.bf16.msra.mxu0 0
    %1130 = vmatprep.mubr.bf16.mxu0 0
    %1131 = vmatmul.mubr.bf16.gmra.mrb[0].mxu0 %v1093
    %v1132 = vpop.f32.mrb[0].mxu0
    %v1133 = vadd.f32 0.0, %v1132
    %v1134 = vpop.f32.mrb[0].mxu0
    %v1135 = vpop.f32.mrb[0].mxu0
    %v1136 = vadd.f32 0.0, %v1135
    %v1137 = vpop.f32.mrb[0].mxu0
    %1138 = vmatprep.mubr.bf16.mxu0 0
    %1139 = vmatmul.mubr.bf16.gmra.mrb[0].mxu0 %v1096
    %v1140 = vpop.f32.mrb[0].mxu0
    %v1141 = vadd.f32 0.0, %v1140
    %v1142 = vpop.f32.mrb[0].mxu0
    %v1143 = vpop.f32.mrb[0].mxu0
    %v1144 = vadd.f32 0.0, %v1143
    %v1145 = vpop.f32.mrb[0].mxu0
    %1146 = vdwg.mxu0
    %v1147 = vadd.f32 %v847, %v1133
    %v1148 = vadd.f32 %v848, %v1136
    %v1149 = vadd.f32 %v849, %v1141
    %v1150 = vadd.f32 %v850, %v1144
    %v1151 = vmul.f32 %v1147, 0.70710677
    %v1152 = vmul.f32 %v1148, 0.70710677
    %v1153 = vmul.f32 %v1149, 0.70710677
    %v1154 = vmul.f32 %v1150, 0.70710677
    %v1155 = vpack.c.bf16 %v1152, %v1151
    %v1156 = vpack.c.bf16 %v1154, %v1153
    %v1157 = vld [vmem:[%s13] sm:$0xf]
    %v1158 = vld [vmem:[%s13 + $0x4] sm:$0xf]
    %v1159 = vld [vmem:[%s13 + $0x8] sm:$0xf]
    %v1160 = vld [vmem:[%s13 + $0xc] sm:$0xf]
    %v1161 = vld [vmem:[%s14] sm:$0x1]
    %v1163 = vlaneseq
    %v1164 = vshrl.u32 %v1163, 7
    %v1165 = vsub.s32 0, %v1164
    %v1166 = vrot.slane %v1161, %v1165
    %1170 = vrot.lane.b32.xlu0 %v1155, 96
    %v1171 = vpop.permute.xlu0 %1170
    %1172 = vrot.lane.b32.xlu0 %v1156, 96
    %v1173 = vpop.permute.xlu0 %1172
    %v1178 = vunpack.c.l.b16 %v1157
    %v1179 = vunpack.c.l.b16 %v1158
    %v1180 = vunpack.c.l.b16 %v1159
    %v1181 = vunpack.c.l.b16 %v1160
    %v1182 = vpack.c.b16 %v1179, %v1178
    %v1183 = vpack.c.b16 %v1181, %v1180
    %v1187 = vsel %vm88, %v1171, 0
    %v1190 = vsel %vm88, %v1173, 0
    %1192 = vmatprep.subr.bf16.mxu0 0
    %1193 = vmatpush1.bf16.msra.mxu0 %v1182
    %1194 = vmatprep.subr.bf16.mxu0 0
    %1195 = vmatpush1.bf16.msra.mxu0 %v1183
    %1196 = vmatprep.subr.bf16.mxu0 0
    %1197 = vmatpush1.bf16.msra.mxu0 0
    %1198 = vmatprep.subr.bf16.mxu0 0
    %1199 = vmatpush1.bf16.msra.mxu0 0
    %1200 = vmatprep.subr.bf16.mxu0 0
    %1201 = vmatpush1.bf16.msra.mxu0 0
    %1202 = vmatprep.subr.bf16.mxu0 0
    %1203 = vmatpush1.bf16.msra.mxu0 0
    %1204 = vmatprep.subr.bf16.mxu0 0
    %1205 = vmatpush1.bf16.msra.mxu0 0
    %1206 = vmatprep.subr.bf16.mxu0 0
    %1207 = vmatpush1.bf16.msra.mxu0 0
    %1208 = vmatprep.subr.bf16.mxu0 0
    %1209 = vmatpush1.bf16.msra.mxu0 0
    %1210 = vmatprep.subr.bf16.mxu0 0
    %1211 = vmatpush1.bf16.msra.mxu0 0
    %1212 = vmatprep.subr.bf16.mxu0 0
    %1213 = vmatpush1.bf16.msra.mxu0 0
    %1214 = vmatprep.subr.bf16.mxu0 0
    %1215 = vmatpush1.bf16.msra.mxu0 0
    %1216 = vmatprep.subr.bf16.mxu0 0
    %1217 = vmatpush1.bf16.msra.mxu0 0
    %1218 = vmatprep.subr.bf16.mxu0 0
    %1219 = vmatpush1.bf16.msra.mxu0 0
    %1220 = vmatprep.subr.bf16.mxu0 0
    %1221 = vmatpush1.bf16.msra.mxu0 0
    %1222 = vmatprep.subr.bf16.mxu0 0
    %1223 = vmatpush1.bf16.msra.mxu0 0
    %1224 = vmatprep.mubr.bf16.mxu0 0
    %1225 = vmatmul.mubr.bf16.gmra.mrb[0].mxu0 %v1187
    %v1226 = vpop.f32.mrb[0].mxu0
    %v1227 = vadd.f32 %v1166, %v1226
    %v1228 = vpop.f32.mrb[0].mxu0
    %v1229 = vpop.f32.mrb[0].mxu0
    %v1230 = vadd.f32 %v1166, %v1229
    %v1231 = vpop.f32.mrb[0].mxu0
    %1232 = vmatprep.mubr.bf16.mxu0 0
    %1233 = vmatmul.mubr.bf16.gmra.mrb[0].mxu0 %v1190
    %v1234 = vpop.f32.mrb[0].mxu0
    %v1235 = vadd.f32 %v1166, %v1234
    %v1236 = vpop.f32.mrb[0].mxu0
    %v1237 = vpop.f32.mrb[0].mxu0
    %v1238 = vadd.f32 %v1166, %v1237
    %v1239 = vpop.f32.mrb[0].mxu0
    %1240 = vdwg.mxu0
    %v1241 = vmax.f32 %v1227, 0.0
    %v1242 = vmax.f32 %v1230, 0.0
    %v1243 = vmax.f32 %v1235, 0.0
    %v1244 = vmax.f32 %v1238, 0.0
    %v1245 = vpack.c.bf16 %v1242, %v1241
    %v1246 = vpack.c.bf16 %v1244, %v1243
    %v1247 = vld [vmem:[%s15] sm:$0xf]
    %v1248 = vld [vmem:[%s15 + $0x4] sm:$0xf]
    %v1249 = vld [vmem:[%s15 + $0x8] sm:$0xf]
    %v1250 = vld [vmem:[%s15 + $0xc] sm:$0xf]
    %v1251 = vld [vmem:[%s16] sm:$0x1]
    %v1253 = vlaneseq
    %v1254 = vshrl.u32 %v1253, 7
    %v1255 = vsub.s32 0, %v1254
    %v1256 = vrot.slane %v1251, %v1255
    %v1262 = vunpack.c.l.b16 %v1247
    %v1263 = vunpack.c.l.b16 %v1248
    %v1264 = vunpack.c.l.b16 %v1249
    %v1265 = vunpack.c.l.b16 %v1250
    %v1266 = vpack.c.b16 %v1263, %v1262
    %v1267 = vpack.c.b16 %v1265, %v1264
    %v1271 = vsel %vm88, %v1245, 0
    %v1274 = vsel %vm88, %v1246, 0
    %1276 = vmatprep.subr.bf16.mxu0 0
    %1277 = vmatpush1.bf16.msra.mxu0 %v1266
    %1278 = vmatprep.subr.bf16.mxu0 0
    %1279 = vmatpush1.bf16.msra.mxu0 %v1267
    %1280 = vmatprep.subr.bf16.mxu0 0
    %1281 = vmatpush1.bf16.msra.mxu0 0
    %1282 = vmatprep.subr.bf16.mxu0 0
    %1283 = vmatpush1.bf16.msra.mxu0 0
    %1284 = vmatprep.subr.bf16.mxu0 0
    %1285 = vmatpush1.bf16.msra.mxu0 0
    %1286 = vmatprep.subr.bf16.mxu0 0
    %1287 = vmatpush1.bf16.msra.mxu0 0
    %1288 = vmatprep.subr.bf16.mxu0 0
    %1289 = vmatpush1.bf16.msra.mxu0 0
    %1290 = vmatprep.subr.bf16.mxu0 0
    %1291 = vmatpush1.bf16.msra.mxu0 0
    %1292 = vmatprep.subr.bf16.mxu0 0
    %1293 = vmatpush1.bf16.msra.mxu0 0
    %1294 = vmatprep.subr.bf16.mxu0 0
    %1295 = vmatpush1.bf16.msra.mxu0 0
    %1296 = vmatprep.subr.bf16.mxu0 0
    %1297 = vmatpush1.bf16.msra.mxu0 0
    %1298 = vmatprep.subr.bf16.mxu0 0
    %1299 = vmatpush1.bf16.msra.mxu0 0
    %1300 = vmatprep.subr.bf16.mxu0 0
    %1301 = vmatpush1.bf16.msra.mxu0 0
    %1302 = vmatprep.subr.bf16.mxu0 0
    %1303 = vmatpush1.bf16.msra.mxu0 0
    %1304 = vmatprep.subr.bf16.mxu0 0
    %1305 = vmatpush1.bf16.msra.mxu0 0
    %1306 = vmatprep.subr.bf16.mxu0 0
    %1307 = vmatpush1.bf16.msra.mxu0 0
    %1308 = vmatprep.mubr.bf16.mxu0 0
    %1309 = vmatmul.mubr.bf16.gmra.mrb[0].mxu0 %v1271
    %v1310 = vpop.f32.mrb[0].mxu0
    %v1311 = vadd.f32 %v1256, %v1310
    %v1312 = vpop.f32.mrb[0].mxu0
    %v1313 = vpop.f32.mrb[0].mxu0
    %v1314 = vadd.f32 %v1256, %v1313
    %v1315 = vpop.f32.mrb[0].mxu0
    %1316 = vmatprep.mubr.bf16.mxu0 0
    %1317 = vmatmul.mubr.bf16.gmra.mrb[0].mxu0 %v1274
    %v1318 = vpop.f32.mrb[0].mxu0
    %v1319 = vadd.f32 %v1256, %v1318
    %v1320 = vpop.f32.mrb[0].mxu0
    %v1321 = vpop.f32.mrb[0].mxu0
    %v1322 = vadd.f32 %v1256, %v1321
    %v1323 = vpop.f32.mrb[0].mxu0
    %1324 = vdwg.mxu0
    %1325 = vst [vmem:[#allocation2] sm:$0xff] %v1311
    %1326 = vst [vmem:[#allocation2 + $0x8] sm:$0xff] %v1314
    %1327 = vst [vmem:[#allocation2 + $0x10] sm:$0xff] %v1319
    %1328 = vst [vmem:[#allocation2 + $0x18] sm:$0xff] %v1322
    // Predicated region
    $region70: #{tpu_custom_call.1} parent=1 // pred_check
      _
    $region71: #{tpu_custom_call.1} parent=1 // pred_check_branch
      %1330 = sbr.rel (0) target = $region73
    $region72: #{tpu_custom_call.1} parent=1 // pred_region
      %s1332 = ssub.s32 512, 512
      %1333 = vsyncadd [#allocation3], %s1332
      %s1334 = sshll.u32 [#allocation2], 4
      %s1335 = int_to_ptr.vmem [resolvable:$true] %s1334
      %1340 = dma.vmem_to_hbm [thread:$0]  %s1335, 512, %s17, [#allocation3], 128, 128, 8
    $region73: #{tpu_custom_call.1} parent=1 // pred_fallthru
      _
    // Predicated region
    $region74: #{tpu_custom_call.1} parent=1 // pred_check
      _
    $region75: #{tpu_custom_call.1} parent=1 // pred_check_branch
      %1342 = sbr.rel (0) target = $region77
    $region76: #{tpu_custom_call.1} parent=1 // pred_region
      %1343 = dma.done [#allocation3], 512
    $region77: #{tpu_custom_call.1} parent=1 // pred_fallthru
      _
    %1344 = vsyncpa [#allocation3], 1

</llo_original>
